<compile_context>
chip_gen: v5e
topology: v5e:2x2
jax: 0.10.0
libtpu: 0.0.40
codegen_flags: <defaults>
</compile_context>

<pallas_src>
import functools
import math

import jax
import jax.numpy as jnp
from jax.experimental import pallas as pl
from jax.experimental.pallas import tpu as pltpu  # noqa: F401  (kept for TODO paths)


# ------------------------------ fused kernel ---------------------------------
def fused_lstm_kernel(x_ref,      # (S*Bp, Dp)   time-major flattened, feature-padded
                      wih_ref,    # (L, Dp, 4H)  pre-scaled (0.5 on i/f/o cols)
                      whh_ref,    # (L, H, 4H)   pre-scaled
                      b_ref,      # (L, 1, 4H)   pre-scaled
                      wfc_ref,    # (H, OUTp)
                      bfc_ref,    # (1, OUTp)
                      out_ref,    # (Bp, OUTp)   lane-dense output
                      *, S, Bp, H, L):
    G = 4 * H

    # Hoisted (1, 4H) post-scale/offset: i/f/o weight columns were pre-scaled by
    # 0.5 in the wrapper, so  tanh(gates)*0.5 + 0.5 == sigmoid(original gates)
    # on those columns, while the g columns stay plain tanh.
    col = jax.lax.broadcasted_iota(jnp.int32, (1, G), 1)
    is_g = (col >= 2 * H) & (col < 3 * H)
    post_scale = jnp.where(is_g, 1.0, 0.5).astype(jnp.float32)
    post_off = jnp.where(is_g, 0.0, 0.5).astype(jnp.float32)

    def run_layer(in_seq, layer, collect_seq):
        d_in = in_seq.shape[1]
        w_ih = wih_ref[layer][:d_in, :]      # static layer index + static slice
        w_hh = whh_ref[layer]                # (H, 4H), loaded once per layer
        bias = b_ref[layer]                  # (1, 4H)

        # Hoisted input projection for ALL timesteps: one MXU matmul + bias.
        proj = jnp.dot(in_seq, w_ih, preferred_element_type=jnp.float32) + bias

        h = jnp.zeros((Bp, H), jnp.float32)
        c = jnp.zeros((Bp, H), jnp.float32)
        hs = []
        # TODO(synk): if S grows past ~32, switch to lax.fori_loop(unroll=4..8)
        # reading proj slices from a VMEM scratch ref to bound vreg live ranges.
        for t in range(S):                   # fully unrolled, static slices
            gates = (jnp.dot(h, w_hh, preferred_element_type=jnp.float32)
                     + proj[t * Bp:(t + 1) * Bp, :])
            act = jnp.tanh(gates) * post_scale + post_off   # one EUP call / step
            i_g = act[:, 0 * H:1 * H]
            f_g = act[:, 1 * H:2 * H]
            g_g = act[:, 2 * H:3 * H]
            o_g = act[:, 3 * H:4 * H]
            c = f_g * c + i_g * g_g
            h = o_g * jnp.tanh(c)
            if collect_seq:
                hs.append(h)
        # Inter-layer sequence stays in vregs (no narrow 32-lane VMEM stores).
        return jnp.concatenate(hs, axis=0) if collect_seq else h

    seq = x_ref[...]
    for layer in range(L - 1):
        seq = run_layer(seq, layer, collect_seq=True)
    h_last = run_layer(seq, L - 1, collect_seq=False)

    # Final Linear on the last timestep -- single lane-dense store.
    out_ref[...] = (jnp.dot(h_last, wfc_ref[...], preferred_element_type=jnp.float32)
                    + bfc_ref[...])


# --------------------------------- wrapper ------------------------------------
@jax.jit
def lstm_model_forward(x, params):
    """x: (B, S, IN) batch_first, like PyTorch LSTMModel.forward."""
    B, S, IN = x.shape
    H = params["lstm"][0]["w_hh"].shape[0]
    L = len(params["lstm"])
    OUT = params["fc_w"].shape[1]

    Bp = max(8, ((B + 7) // 8) * 8)          # sublane-aligned batch
    OUTp = ((OUT + 127) // 128) * 128        # lane-dense FC output
    INp = ((IN + 7) // 8) * 8                # feature dim 28 -> 32
    Dp = max(INp, H)                         # common input dim for stacked w_ih

    # (B,S,IN) -> time-major (S,B,IN) -> pad batch + features -> flatten (t, b).
    x_tm = jnp.transpose(x, (1, 0, 2))
    x_tm = jnp.pad(x_tm, ((0, 0), (0, Bp - B), (0, Dp - IN)))
    x2d = x_tm.reshape(S * Bp, Dp)

    # Pre-scale i/f/o gate columns by 0.5 (sigmoid-via-tanh hoist) and stack
    # the per-layer weights into 3 operands (cuts the DMA prologue ~2x).
    gate_scale = jnp.concatenate([
        jnp.full((2 * H,), 0.5, jnp.float32),   # i, f
        jnp.ones((H,), jnp.float32),            # g (tanh, unscaled)
        jnp.full((H,), 0.5, jnp.float32)])      # o

    wih_l, whh_l, b_l = [], [], []
    for layer in params["lstm"]:
        w_ih = layer["w_ih"] * gate_scale
        w_hh = layer["w_hh"] * gate_scale
        b = layer["b"] * gate_scale
        w_ih = jnp.pad(w_ih, ((0, Dp - w_ih.shape[0]), (0, 0)))
        wih_l.append(w_ih)
        whh_l.append(w_hh)
        b_l.append(b)
    wih_stack = jnp.stack(wih_l)     # (L, Dp, 4H)
    whh_stack = jnp.stack(whh_l)     # (L, H, 4H)
    b_stack = jnp.stack(b_l)         # (L, 1, 4H)

    wfc = jnp.pad(params["fc_w"], ((0, 0), (0, OUTp - OUT)))
    bfc = jnp.pad(params["fc_b"], ((0, 0), (0, OUTp - OUT)))

    kernel = functools.partial(fused_lstm_kernel, S=S, Bp=Bp, H=H, L=L)

    out = pl.pallas_call(
        kernel,
        out_shape=jax.ShapeDtypeStruct((Bp, OUTp), jnp.float32),
    )(x2d, wih_stack, whh_stack, b_stack, wfc, bfc)

    # TODO(synk): at large batch add a batch grid axis with
    # dimension_semantics=("parallel",) to shard across v7x's two TensorCores;
    # at larger hidden_dim cast W_ih/W_hh + inter-layer seq to bf16 (f32
    # accumulate) and set vmem_limit_bytes for v7x's 64 MiB VMEM (keep f32
    # activations on v5e: no native bf16 VPU/EUP).
    return out[:B, :OUT]


# --------------------------- deterministic parameters -------------------------
def init_params(key, input_dim, hidden_dim, layer_dim, output_dim):
    params = {"lstm": []}
    k = 1.0 / math.sqrt(hidden_dim)
    for layer in range(layer_dim):
        in_dim = input_dim if layer == 0 else hidden_dim
        key, k1, k2, k3, k4 = jax.random.split(key, 5)
        w_ih = jax.random.uniform(k1, (in_dim, 4 * hidden_dim), jnp.float32, -k, k)
        w_hh = jax.random.uniform(k2, (hidden_dim, 4 * hidden_dim), jnp.float32, -k, k)
        b_ih = jax.random.uniform(k3, (1, 4 * hidden_dim), jnp.float32, -k, k)
        b_hh = jax.random.uniform(k4, (1, 4 * hidden_dim), jnp.float32, -k, k)
        params["lstm"].append({"w_ih": w_ih, "w_hh": w_hh, "b": b_ih + b_hh})
    key, k5, k6 = jax.random.split(key, 3)
    kf = 1.0 / math.sqrt(hidden_dim)
    params["fc_w"] = jax.random.uniform(k5, (hidden_dim, output_dim), jnp.float32, -kf, kf)
    params["fc_b"] = jax.random.uniform(k6, (1, output_dim), jnp.float32, -kf, kf)
    return params


# -------------------------- pure-JAX reference (check) ------------------------
def reference_forward(x, params):
    h_seq = jnp.transpose(x, (1, 0, 2))
    for layer in params["lstm"]:
        S, B, _ = h_seq.shape
        H = layer["w_hh"].shape[0]

        def step(carry, x_t):
            h, c = carry
            gates = x_t @ layer["w_ih"] + h @ layer["w_hh"] + layer["b"]
            i_g = jax.nn.sigmoid(gates[:, 0 * H:1 * H])
            f_g = jax.nn.sigmoid(gates[:, 1 * H:2 * H])
            g_g = jnp.tanh(gates[:, 2 * H:3 * H])
            o_g = jax.nn.sigmoid(gates[:, 3 * H:4 * H])
            c_new = f_g * c + i_g * g_g
            h_new = o_g * jnp.tanh(c_new)
            return (h_new, c_new), h_new

        init = (jnp.zeros((B, H), jnp.float32), jnp.zeros((B, H), jnp.float32))
        _, h_seq = jax.lax.scan(step, init, h_seq)
    return h_seq[-1] @ params["fc_w"] + params["fc_b"]


if __name__ == "__main__":
    # Small shapes consistent with the module: seq of 28-dim features.
    batch, seq = 2, 8
    input_dim, hidden_dim, layer_dim, output_dim = 28, 32, 3, 10

    key = jax.random.PRNGKey(0)
    key, xk = jax.random.split(key)
    x = jax.random.normal(xk, (batch, seq, input_dim), jnp.float32)

    params = init_params(key, input_dim, hidden_dim, layer_dim, output_dim)

    out = lstm_model_forward(x, params)
    out = jax.block_until_ready(out)

    ref = reference_forward(x, params)
    assert out.shape == (batch, output_dim)
    assert jnp.allclose(out, ref, atol=1e-4, rtol=1e-4), "mismatch vs reference"

    print("KERNEL_OK")
</pallas_src>

<mosaic_0001>
module attributes {stable_mosaic.version = 11 : i64} {
  func.func @fused_lstm_kernel(%arg0: memref<64x32xf32, #tpu.memory_space<vmem>>, %arg1: memref<3x32x128xf32, #tpu.memory_space<vmem>>, %arg2: memref<3x32x128xf32, #tpu.memory_space<vmem>>, %arg3: memref<3x1x128xf32, #tpu.memory_space<vmem>>, %arg4: memref<32x128xf32, #tpu.memory_space<vmem>>, %arg5: memref<1x128xf32, #tpu.memory_space<vmem>>, %arg6: memref<8x128xf32, #tpu.memory_space<vmem>>) attributes {dimension_semantics = [], scalar_prefetch = 0 : i64, scratch_operands = 0 : i64, tpu.core_type = #tpu.core_type<tc>} {
    %0 = tpu.iota {dimensions = array<i32: 1>} : vector<1x128xi32>
    %c64_i32 = arith.constant 64 : i32
    %1 = vector.broadcast %c64_i32 : i32 to vector<1x128xi32>
    %2 = arith.cmpi sge, %0, %1 : vector<1x128xi32>
    %c96_i32 = arith.constant 96 : i32
    %3 = vector.broadcast %c96_i32 : i32 to vector<1x128xi32>
    %4 = arith.cmpi slt, %0, %3 : vector<1x128xi32>
    %5 = arith.andi %2, %4 : vector<1x128xi1>
    %cst = arith.constant 1.000000e+00 : f32
    %cst_0 = arith.constant 5.000000e-01 : f32
    %6 = vector.broadcast %cst : f32 to vector<1x128xf32>
    %7 = vector.broadcast %cst_0 : f32 to vector<1x128xf32>
    %8 = arith.select %5, %6, %7 : vector<1x128xi1>, vector<1x128xf32>
    %cst_1 = arith.constant 0.000000e+00 : f32
    %cst_2 = arith.constant 5.000000e-01 : f32
    %9 = vector.broadcast %cst_1 : f32 to vector<1x128xf32>
    %10 = vector.broadcast %cst_2 : f32 to vector<1x128xf32>
    %11 = arith.select %5, %9, %10 : vector<1x128xi1>, vector<1x128xf32>
    %c0 = arith.constant 0 : index
    %c0_3 = arith.constant 0 : index
    %12 = vector.load %arg0[%c0, %c0_3] : memref<64x32xf32, #tpu.memory_space<vmem>>, vector<64x32xf32>
    %c0_4 = arith.constant 0 : index
    %c0_5 = arith.constant 0 : index
    %c0_6 = arith.constant 0 : index
    %13 = vector.load %arg1[%c0_4, %c0_5, %c0_6] : memref<3x32x128xf32, #tpu.memory_space<vmem>>, vector<1x32x128xf32>
    %14 = vector.shape_cast %13 : vector<1x32x128xf32> to vector<32x128xf32>
    %c0_7 = arith.constant 0 : index
    %c0_8 = arith.constant 0 : index
    %c0_9 = arith.constant 0 : index
    %15 = vector.load %arg2[%c0_7, %c0_8, %c0_9] : memref<3x32x128xf32, #tpu.memory_space<vmem>>, vector<1x32x128xf32>
    %16 = vector.shape_cast %15 : vector<1x32x128xf32> to vector<32x128xf32>
    %c0_10 = arith.constant 0 : index
    %c0_11 = arith.constant 0 : index
    %c0_12 = arith.constant 0 : index
    %17 = vector.load %arg3[%c0_10, %c0_11, %c0_12] : memref<3x1x128xf32, #tpu.memory_space<vmem>>, vector<1x1x128xf32>
    %18 = vector.shape_cast %17 : vector<1x1x128xf32> to vector<1x128xf32>
    %cst_13 = arith.constant dense<0.000000e+00> : vector<64x128xf32>
    %19 = tpu.matmul %12, %14, %cst_13 {dimension_numbers = #tpu.dot_dimension_numbers<[1], [0], [0], [1], [0, 0, 1, 1], [], []>} : vector<64x32xf32>, vector<32x128xf32>, vector<64x128xf32> -> vector<64x128xf32>
    %20 = vector.broadcast %18 : vector<1x128xf32> to vector<64x128xf32>
    %21 = arith.addf %19, %20 : vector<64x128xf32>
    %cst_14 = arith.constant 0.000000e+00 : f32
    %22 = vector.broadcast %cst_14 : f32 to vector<8x32xf32>
    %cst_15 = arith.constant 0.000000e+00 : f32
    %23 = vector.broadcast %cst_15 : f32 to vector<8x32xf32>
    %cst_16 = arith.constant dense<0.000000e+00> : vector<8x128xf32>
    %24 = tpu.matmul %22, %16, %cst_16 {dimension_numbers = #tpu.dot_dimension_numbers<[1], [0], [0], [1], [0, 0, 1, 1], [], []>} : vector<8x32xf32>, vector<32x128xf32>, vector<8x128xf32> -> vector<8x128xf32>
    %25 = vector.extract_strided_slice %21 {offsets = [0, 0], sizes = [8, 128], strides = [1, 1]} : vector<64x128xf32> to vector<8x128xf32>
    %26 = arith.addf %24, %25 : vector<8x128xf32>
    %27 = math.tanh %26 : vector<8x128xf32>
    %28 = vector.broadcast %8 : vector<1x128xf32> to vector<8x128xf32>
    %29 = arith.mulf %27, %28 : vector<8x128xf32>
    %30 = vector.broadcast %11 : vector<1x128xf32> to vector<8x128xf32>
    %31 = arith.addf %29, %30 : vector<8x128xf32>
    %32 = vector.extract_strided_slice %31 {offsets = [0, 0], sizes = [8, 32], strides = [1, 1]} : vector<8x128xf32> to vector<8x32xf32>
    %33 = vector.extract_strided_slice %31 {offsets = [0, 32], sizes = [8, 32], strides = [1, 1]} : vector<8x128xf32> to vector<8x32xf32>
    %34 = vector.extract_strided_slice %31 {offsets = [0, 64], sizes = [8, 32], strides = [1, 1]} : vector<8x128xf32> to vector<8x32xf32>
    %35 = vector.extract_strided_slice %31 {offsets = [0, 96], sizes = [8, 32], strides = [1, 1]} : vector<8x128xf32> to vector<8x32xf32>
    %36 = arith.mulf %33, %23 : vector<8x32xf32>
    %37 = arith.mulf %32, %34 : vector<8x32xf32>
    %38 = arith.addf %36, %37 : vector<8x32xf32>
    %39 = math.tanh %38 : vector<8x32xf32>
    %40 = arith.mulf %35, %39 : vector<8x32xf32>
    %cst_17 = arith.constant dense<0.000000e+00> : vector<8x128xf32>
    %41 = tpu.matmul %40, %16, %cst_17 {dimension_numbers = #tpu.dot_dimension_numbers<[1], [0], [0], [1], [0, 0, 1, 1], [], []>} : vector<8x32xf32>, vector<32x128xf32>, vector<8x128xf32> -> vector<8x128xf32>
    %42 = vector.extract_strided_slice %21 {offsets = [8, 0], sizes = [8, 128], strides = [1, 1]} : vector<64x128xf32> to vector<8x128xf32>
    %43 = arith.addf %41, %42 : vector<8x128xf32>
    %44 = math.tanh %43 : vector<8x128xf32>
    %45 = vector.broadcast %8 : vector<1x128xf32> to vector<8x128xf32>
    %46 = arith.mulf %44, %45 : vector<8x128xf32>
    %47 = vector.broadcast %11 : vector<1x128xf32> to vector<8x128xf32>
    %48 = arith.addf %46, %47 : vector<8x128xf32>
    %49 = vector.extract_strided_slice %48 {offsets = [0, 0], sizes = [8, 32], strides = [1, 1]} : vector<8x128xf32> to vector<8x32xf32>
    %50 = vector.extract_strided_slice %48 {offsets = [0, 32], sizes = [8, 32], strides = [1, 1]} : vector<8x128xf32> to vector<8x32xf32>
    %51 = vector.extract_strided_slice %48 {offsets = [0, 64], sizes = [8, 32], strides = [1, 1]} : vector<8x128xf32> to vector<8x32xf32>
    %52 = vector.extract_strided_slice %48 {offsets = [0, 96], sizes = [8, 32], strides = [1, 1]} : vector<8x128xf32> to vector<8x32xf32>
    %53 = arith.mulf %50, %38 : vector<8x32xf32>
    %54 = arith.mulf %49, %51 : vector<8x32xf32>
    %55 = arith.addf %53, %54 : vector<8x32xf32>
    %56 = math.tanh %55 : vector<8x32xf32>
    %57 = arith.mulf %52, %56 : vector<8x32xf32>
    %cst_18 = arith.constant dense<0.000000e+00> : vector<8x128xf32>
    %58 = tpu.matmul %57, %16, %cst_18 {dimension_numbers = #tpu.dot_dimension_numbers<[1], [0], [0], [1], [0, 0, 1, 1], [], []>} : vector<8x32xf32>, vector<32x128xf32>, vector<8x128xf32> -> vector<8x128xf32>
    %59 = vector.extract_strided_slice %21 {offsets = [16, 0], sizes = [8, 128], strides = [1, 1]} : vector<64x128xf32> to vector<8x128xf32>
    %60 = arith.addf %58, %59 : vector<8x128xf32>
    %61 = math.tanh %60 : vector<8x128xf32>
    %62 = vector.broadcast %8 : vector<1x128xf32> to vector<8x128xf32>
    %63 = arith.mulf %61, %62 : vector<8x128xf32>
    %64 = vector.broadcast %11 : vector<1x128xf32> to vector<8x128xf32>
    %65 = arith.addf %63, %64 : vector<8x128xf32>
    %66 = vector.extract_strided_slice %65 {offsets = [0, 0], sizes = [8, 32], strides = [1, 1]} : vector<8x128xf32> to vector<8x32xf32>
    %67 = vector.extract_strided_slice %65 {offsets = [0, 32], sizes = [8, 32], strides = [1, 1]} : vector<8x128xf32> to vector<8x32xf32>
    %68 = vector.extract_strided_slice %65 {offsets = [0, 64], sizes = [8, 32], strides = [1, 1]} : vector<8x128xf32> to vector<8x32xf32>
    %69 = vector.extract_strided_slice %65 {offsets = [0, 96], sizes = [8, 32], strides = [1, 1]} : vector<8x128xf32> to vector<8x32xf32>
    %70 = arith.mulf %67, %55 : vector<8x32xf32>
    %71 = arith.mulf %66, %68 : vector<8x32xf32>
    %72 = arith.addf %70, %71 : vector<8x32xf32>
    %73 = math.tanh %72 : vector<8x32xf32>
    %74 = arith.mulf %69, %73 : vector<8x32xf32>
    %cst_19 = arith.constant dense<0.000000e+00> : vector<8x128xf32>
    %75 = tpu.matmul %74, %16, %cst_19 {dimension_numbers = #tpu.dot_dimension_numbers<[1], [0], [0], [1], [0, 0, 1, 1], [], []>} : vector<8x32xf32>, vector<32x128xf32>, vector<8x128xf32> -> vector<8x128xf32>
    %76 = vector.extract_strided_slice %21 {offsets = [24, 0], sizes = [8, 128], strides = [1, 1]} : vector<64x128xf32> to vector<8x128xf32>
    %77 = arith.addf %75, %76 : vector<8x128xf32>
    %78 = math.tanh %77 : vector<8x128xf32>
    %79 = vector.broadcast %8 : vector<1x128xf32> to vector<8x128xf32>
    %80 = arith.mulf %78, %79 : vector<8x128xf32>
    %81 = vector.broadcast %11 : vector<1x128xf32> to vector<8x128xf32>
    %82 = arith.addf %80, %81 : vector<8x128xf32>
    %83 = vector.extract_strided_slice %82 {offsets = [0, 0], sizes = [8, 32], strides = [1, 1]} : vector<8x128xf32> to vector<8x32xf32>
    %84 = vector.extract_strided_slice %82 {offsets = [0, 32], sizes = [8, 32], strides = [1, 1]} : vector<8x128xf32> to vector<8x32xf32>
    %85 = vector.extract_strided_slice %82 {offsets = [0, 64], sizes = [8, 32], strides = [1, 1]} : vector<8x128xf32> to vector<8x32xf32>
    %86 = vector.extract_strided_slice %82 {offsets = [0, 96], sizes = [8, 32], strides = [1, 1]} : vector<8x128xf32> to vector<8x32xf32>
    %87 = arith.mulf %84, %72 : vector<8x32xf32>
    %88 = arith.mulf %83, %85 : vector<8x32xf32>
    %89 = arith.addf %87, %88 : vector<8x32xf32>
    %90 = math.tanh %89 : vector<8x32xf32>
    %91 = arith.mulf %86, %90 : vector<8x32xf32>
    %cst_20 = arith.constant dense<0.000000e+00> : vector<8x128xf32>
    %92 = tpu.matmul %91, %16, %cst_20 {dimension_numbers = #tpu.dot_dimension_numbers<[1], [0], [0], [1], [0, 0, 1, 1], [], []>} : vector<8x32xf32>, vector<32x128xf32>, vector<8x128xf32> -> vector<8x128xf32>
    %93 = vector.extract_strided_slice %21 {offsets = [32, 0], sizes = [8, 128], strides = [1, 1]} : vector<64x128xf32> to vector<8x128xf32>
    %94 = arith.addf %92, %93 : vector<8x128xf32>
    %95 = math.tanh %94 : vector<8x128xf32>
    %96 = vector.broadcast %8 : vector<1x128xf32> to vector<8x128xf32>
    %97 = arith.mulf %95, %96 : vector<8x128xf32>
    %98 = vector.broadcast %11 : vector<1x128xf32> to vector<8x128xf32>
    %99 = arith.addf %97, %98 : vector<8x128xf32>
    %100 = vector.extract_strided_slice %99 {offsets = [0, 0], sizes = [8, 32], strides = [1, 1]} : vector<8x128xf32> to vector<8x32xf32>
    %101 = vector.extract_strided_slice %99 {offsets = [0, 32], sizes = [8, 32], strides = [1, 1]} : vector<8x128xf32> to vector<8x32xf32>
    %102 = vector.extract_strided_slice %99 {offsets = [0, 64], sizes = [8, 32], strides = [1, 1]} : vector<8x128xf32> to vector<8x32xf32>
    %103 = vector.extract_strided_slice %99 {offsets = [0, 96], sizes = [8, 32], strides = [1, 1]} : vector<8x128xf32> to vector<8x32xf32>
    %104 = arith.mulf %101, %89 : vector<8x32xf32>
    %105 = arith.mulf %100, %102 : vector<8x32xf32>
    %106 = arith.addf %104, %105 : vector<8x32xf32>
    %107 = math.tanh %106 : vector<8x32xf32>
    %108 = arith.mulf %103, %107 : vector<8x32xf32>
    %cst_21 = arith.constant dense<0.000000e+00> : vector<8x128xf32>
    %109 = tpu.matmul %108, %16, %cst_21 {dimension_numbers = #tpu.dot_dimension_numbers<[1], [0], [0], [1], [0, 0, 1, 1], [], []>} : vector<8x32xf32>, vector<32x128xf32>, vector<8x128xf32> -> vector<8x128xf32>
    %110 = vector.extract_strided_slice %21 {offsets = [40, 0], sizes = [8, 128], strides = [1, 1]} : vector<64x128xf32> to vector<8x128xf32>
    %111 = arith.addf %109, %110 : vector<8x128xf32>
    %112 = math.tanh %111 : vector<8x128xf32>
    %113 = vector.broadcast %8 : vector<1x128xf32> to vector<8x128xf32>
    %114 = arith.mulf %112, %113 : vector<8x128xf32>
    %115 = vector.broadcast %11 : vector<1x128xf32> to vector<8x128xf32>
    %116 = arith.addf %114, %115 : vector<8x128xf32>
    %117 = vector.extract_strided_slice %116 {offsets = [0, 0], sizes = [8, 32], strides = [1, 1]} : vector<8x128xf32> to vector<8x32xf32>
    %118 = vector.extract_strided_slice %116 {offsets = [0, 32], sizes = [8, 32], strides = [1, 1]} : vector<8x128xf32> to vector<8x32xf32>
    %119 = vector.extract_strided_slice %116 {offsets = [0, 64], sizes = [8, 32], strides = [1, 1]} : vector<8x128xf32> to vector<8x32xf32>
    %120 = vector.extract_strided_slice %116 {offsets = [0, 96], sizes = [8, 32], strides = [1, 1]} : vector<8x128xf32> to vector<8x32xf32>
    %121 = arith.mulf %118, %106 : vector<8x32xf32>
    %122 = arith.mulf %117, %119 : vector<8x32xf32>
    %123 = arith.addf %121, %122 : vector<8x32xf32>
    %124 = math.tanh %123 : vector<8x32xf32>
    %125 = arith.mulf %120, %124 : vector<8x32xf32>
    %cst_22 = arith.constant dense<0.000000e+00> : vector<8x128xf32>
    %126 = tpu.matmul %125, %16, %cst_22 {dimension_numbers = #tpu.dot_dimension_numbers<[1], [0], [0], [1], [0, 0, 1, 1], [], []>} : vector<8x32xf32>, vector<32x128xf32>, vector<8x128xf32> -> vector<8x128xf32>
    %127 = vector.extract_strided_slice %21 {offsets = [48, 0], sizes = [8, 128], strides = [1, 1]} : vector<64x128xf32> to vector<8x128xf32>
    %128 = arith.addf %126, %127 : vector<8x128xf32>
    %129 = math.tanh %128 : vector<8x128xf32>
    %130 = vector.broadcast %8 : vector<1x128xf32> to vector<8x128xf32>
    %131 = arith.mulf %129, %130 : vector<8x128xf32>
    %132 = vector.broadcast %11 : vector<1x128xf32> to vector<8x128xf32>
    %133 = arith.addf %131, %132 : vector<8x128xf32>
    %134 = vector.extract_strided_slice %133 {offsets = [0, 0], sizes = [8, 32], strides = [1, 1]} : vector<8x128xf32> to vector<8x32xf32>
    %135 = vector.extract_strided_slice %133 {offsets = [0, 32], sizes = [8, 32], strides = [1, 1]} : vector<8x128xf32> to vector<8x32xf32>
    %136 = vector.extract_strided_slice %133 {offsets = [0, 64], sizes = [8, 32], strides = [1, 1]} : vector<8x128xf32> to vector<8x32xf32>
    %137 = vector.extract_strided_slice %133 {offsets = [0, 96], sizes = [8, 32], strides = [1, 1]} : vector<8x128xf32> to vector<8x32xf32>
    %138 = arith.mulf %135, %123 : vector<8x32xf32>
    %139 = arith.mulf %134, %136 : vector<8x32xf32>
    %140 = arith.addf %138, %139 : vector<8x32xf32>
    %141 = math.tanh %140 : vector<8x32xf32>
    %142 = arith.mulf %137, %141 : vector<8x32xf32>
    %cst_23 = arith.constant dense<0.000000e+00> : vector<8x128xf32>
    %143 = tpu.matmul %142, %16, %cst_23 {dimension_numbers = #tpu.dot_dimension_numbers<[1], [0], [0], [1], [0, 0, 1, 1], [], []>} : vector<8x32xf32>, vector<32x128xf32>, vector<8x128xf32> -> vector<8x128xf32>
    %144 = vector.extract_strided_slice %21 {offsets = [56, 0], sizes = [8, 128], strides = [1, 1]} : vector<64x128xf32> to vector<8x128xf32>
    %145 = arith.addf %143, %144 : vector<8x128xf32>
    %146 = math.tanh %145 : vector<8x128xf32>
    %147 = vector.broadcast %8 : vector<1x128xf32> to vector<8x128xf32>
    %148 = arith.mulf %146, %147 : vector<8x128xf32>
    %149 = vector.broadcast %11 : vector<1x128xf32> to vector<8x128xf32>
    %150 = arith.addf %148, %149 : vector<8x128xf32>
    %151 = vector.extract_strided_slice %150 {offsets = [0, 0], sizes = [8, 32], strides = [1, 1]} : vector<8x128xf32> to vector<8x32xf32>
    %152 = vector.extract_strided_slice %150 {offsets = [0, 32], sizes = [8, 32], strides = [1, 1]} : vector<8x128xf32> to vector<8x32xf32>
    %153 = vector.extract_strided_slice %150 {offsets = [0, 64], sizes = [8, 32], strides = [1, 1]} : vector<8x128xf32> to vector<8x32xf32>
    %154 = vector.extract_strided_slice %150 {offsets = [0, 96], sizes = [8, 32], strides = [1, 1]} : vector<8x128xf32> to vector<8x32xf32>
    %155 = arith.mulf %152, %140 : vector<8x32xf32>
    %156 = arith.mulf %151, %153 : vector<8x32xf32>
    %157 = arith.addf %155, %156 : vector<8x32xf32>
    %158 = math.tanh %157 : vector<8x32xf32>
    %159 = arith.mulf %154, %158 : vector<8x32xf32>
    %160 = tpu.concatenate %40, %57, %74, %91, %108, %125, %142, %159 in 0 : vector<8x32xf32>, vector<8x32xf32>, vector<8x32xf32>, vector<8x32xf32>, vector<8x32xf32>, vector<8x32xf32>, vector<8x32xf32>, vector<8x32xf32> -> vector<64x32xf32>
    %c1 = arith.constant 1 : index
    %c0_24 = arith.constant 0 : index
    %c0_25 = arith.constant 0 : index
    %161 = vector.load %arg1[%c1, %c0_24, %c0_25] : memref<3x32x128xf32, #tpu.memory_space<vmem>>, vector<1x32x128xf32>
    %162 = vector.shape_cast %161 : vector<1x32x128xf32> to vector<32x128xf32>
    %c1_26 = arith.constant 1 : index
    %c0_27 = arith.constant 0 : index
    %c0_28 = arith.constant 0 : index
    %163 = vector.load %arg2[%c1_26, %c0_27, %c0_28] : memref<3x32x128xf32, #tpu.memory_space<vmem>>, vector<1x32x128xf32>
    %164 = vector.shape_cast %163 : vector<1x32x128xf32> to vector<32x128xf32>
    %c1_29 = arith.constant 1 : index
    %c0_30 = arith.constant 0 : index
    %c0_31 = arith.constant 0 : index
    %165 = vector.load %arg3[%c1_29, %c0_30, %c0_31] : memref<3x1x128xf32, #tpu.memory_space<vmem>>, vector<1x1x128xf32>
    %166 = vector.shape_cast %165 : vector<1x1x128xf32> to vector<1x128xf32>
    %cst_32 = arith.constant dense<0.000000e+00> : vector<64x128xf32>
    %167 = tpu.matmul %160, %162, %cst_32 {dimension_numbers = #tpu.dot_dimension_numbers<[1], [0], [0], [1], [0, 0, 1, 1], [], []>} : vector<64x32xf32>, vector<32x128xf32>, vector<64x128xf32> -> vector<64x128xf32>
    %168 = vector.broadcast %166 : vector<1x128xf32> to vector<64x128xf32>
    %169 = arith.addf %167, %168 : vector<64x128xf32>
    %cst_33 = arith.constant 0.000000e+00 : f32
    %170 = vector.broadcast %cst_33 : f32 to vector<8x32xf32>
    %cst_34 = arith.constant 0.000000e+00 : f32
    %171 = vector.broadcast %cst_34 : f32 to vector<8x32xf32>
    %cst_35 = arith.constant dense<0.000000e+00> : vector<8x128xf32>
    %172 = tpu.matmul %170, %164, %cst_35 {dimension_numbers = #tpu.dot_dimension_numbers<[1], [0], [0], [1], [0, 0, 1, 1], [], []>} : vector<8x32xf32>, vector<32x128xf32>, vector<8x128xf32> -> vector<8x128xf32>
    %173 = vector.extract_strided_slice %169 {offsets = [0, 0], sizes = [8, 128], strides = [1, 1]} : vector<64x128xf32> to vector<8x128xf32>
    %174 = arith.addf %172, %173 : vector<8x128xf32>
    %175 = math.tanh %174 : vector<8x128xf32>
    %176 = vector.broadcast %8 : vector<1x128xf32> to vector<8x128xf32>
    %177 = arith.mulf %175, %176 : vector<8x128xf32>
    %178 = vector.broadcast %11 : vector<1x128xf32> to vector<8x128xf32>
    %179 = arith.addf %177, %178 : vector<8x128xf32>
    %180 = vector.extract_strided_slice %179 {offsets = [0, 0], sizes = [8, 32], strides = [1, 1]} : vector<8x128xf32> to vector<8x32xf32>
    %181 = vector.extract_strided_slice %179 {offsets = [0, 32], sizes = [8, 32], strides = [1, 1]} : vector<8x128xf32> to vector<8x32xf32>
    %182 = vector.extract_strided_slice %179 {offsets = [0, 64], sizes = [8, 32], strides = [1, 1]} : vector<8x128xf32> to vector<8x32xf32>
    %183 = vector.extract_strided_slice %179 {offsets = [0, 96], sizes = [8, 32], strides = [1, 1]} : vector<8x128xf32> to vector<8x32xf32>
    %184 = arith.mulf %181, %171 : vector<8x32xf32>
    %185 = arith.mulf %180, %182 : vector<8x32xf32>
    %186 = arith.addf %184, %185 : vector<8x32xf32>
    %187 = math.tanh %186 : vector<8x32xf32>
    %188 = arith.mulf %183, %187 : vector<8x32xf32>
    %cst_36 = arith.constant dense<0.000000e+00> : vector<8x128xf32>
    %189 = tpu.matmul %188, %164, %cst_36 {dimension_numbers = #tpu.dot_dimension_numbers<[1], [0], [0], [1], [0, 0, 1, 1], [], []>} : vector<8x32xf32>, vector<32x128xf32>, vector<8x128xf32> -> vector<8x128xf32>
    %190 = vector.extract_strided_slice %169 {offsets = [8, 0], sizes = [8, 128], strides = [1, 1]} : vector<64x128xf32> to vector<8x128xf32>
    %191 = arith.addf %189, %190 : vector<8x128xf32>
    %192 = math.tanh %191 : vector<8x128xf32>
    %193 = vector.broadcast %8 : vector<1x128xf32> to vector<8x128xf32>
    %194 = arith.mulf %192, %193 : vector<8x128xf32>
    %195 = vector.broadcast %11 : vector<1x128xf32> to vector<8x128xf32>
    %196 = arith.addf %194, %195 : vector<8x128xf32>
    %197 = vector.extract_strided_slice %196 {offsets = [0, 0], sizes = [8, 32], strides = [1, 1]} : vector<8x128xf32> to vector<8x32xf32>
    %198 = vector.extract_strided_slice %196 {offsets = [0, 32], sizes = [8, 32], strides = [1, 1]} : vector<8x128xf32> to vector<8x32xf32>
    %199 = vector.extract_strided_slice %196 {offsets = [0, 64], sizes = [8, 32], strides = [1, 1]} : vector<8x128xf32> to vector<8x32xf32>
    %200 = vector.extract_strided_slice %196 {offsets = [0, 96], sizes = [8, 32], strides = [1, 1]} : vector<8x128xf32> to vector<8x32xf32>
    %201 = arith.mulf %198, %186 : vector<8x32xf32>
    %202 = arith.mulf %197, %199 : vector<8x32xf32>
    %203 = arith.addf %201, %202 : vector<8x32xf32>
    %204 = math.tanh %203 : vector<8x32xf32>
    %205 = arith.mulf %200, %204 : vector<8x32xf32>
    %cst_37 = arith.constant dense<0.000000e+00> : vector<8x128xf32>
    %206 = tpu.matmul %205, %164, %cst_37 {dimension_numbers = #tpu.dot_dimension_numbers<[1], [0], [0], [1], [0, 0, 1, 1], [], []>} : vector<8x32xf32>, vector<32x128xf32>, vector<8x128xf32> -> vector<8x128xf32>
    %207 = vector.extract_strided_slice %169 {offsets = [16, 0], sizes = [8, 128], strides = [1, 1]} : vector<64x128xf32> to vector<8x128xf32>
    %208 = arith.addf %206, %207 : vector<8x128xf32>
    %209 = math.tanh %208 : vector<8x128xf32>
    %210 = vector.broadcast %8 : vector<1x128xf32> to vector<8x128xf32>
    %211 = arith.mulf %209, %210 : vector<8x128xf32>
    %212 = vector.broadcast %11 : vector<1x128xf32> to vector<8x128xf32>
    %213 = arith.addf %211, %212 : vector<8x128xf32>
    %214 = vector.extract_strided_slice %213 {offsets = [0, 0], sizes = [8, 32], strides = [1, 1]} : vector<8x128xf32> to vector<8x32xf32>
    %215 = vector.extract_strided_slice %213 {offsets = [0, 32], sizes = [8, 32], strides = [1, 1]} : vector<8x128xf32> to vector<8x32xf32>
    %216 = vector.extract_strided_slice %213 {offsets = [0, 64], sizes = [8, 32], strides = [1, 1]} : vector<8x128xf32> to vector<8x32xf32>
    %217 = vector.extract_strided_slice %213 {offsets = [0, 96], sizes = [8, 32], strides = [1, 1]} : vector<8x128xf32> to vector<8x32xf32>
    %218 = arith.mulf %215, %203 : vector<8x32xf32>
    %219 = arith.mulf %214, %216 : vector<8x32xf32>
    %220 = arith.addf %218, %219 : vector<8x32xf32>
    %221 = math.tanh %220 : vector<8x32xf32>
    %222 = arith.mulf %217, %221 : vector<8x32xf32>
    %cst_38 = arith.constant dense<0.000000e+00> : vector<8x128xf32>
    %223 = tpu.matmul %222, %164, %cst_38 {dimension_numbers = #tpu.dot_dimension_numbers<[1], [0], [0], [1], [0, 0, 1, 1], [], []>} : vector<8x32xf32>, vector<32x128xf32>, vector<8x128xf32> -> vector<8x128xf32>
    %224 = vector.extract_strided_slice %169 {offsets = [24, 0], sizes = [8, 128], strides = [1, 1]} : vector<64x128xf32> to vector<8x128xf32>
    %225 = arith.addf %223, %224 : vector<8x128xf32>
    %226 = math.tanh %225 : vector<8x128xf32>
    %227 = vector.broadcast %8 : vector<1x128xf32> to vector<8x128xf32>
    %228 = arith.mulf %226, %227 : vector<8x128xf32>
    %229 = vector.broadcast %11 : vector<1x128xf32> to vector<8x128xf32>
    %230 = arith.addf %228, %229 : vector<8x128xf32>
    %231 = vector.extract_strided_slice %230 {offsets = [0, 0], sizes = [8, 32], strides = [1, 1]} : vector<8x128xf32> to vector<8x32xf32>
    %232 = vector.extract_strided_slice %230 {offsets = [0, 32], sizes = [8, 32], strides = [1, 1]} : vector<8x128xf32> to vector<8x32xf32>
    %233 = vector.extract_strided_slice %230 {offsets = [0, 64], sizes = [8, 32], strides = [1, 1]} : vector<8x128xf32> to vector<8x32xf32>
    %234 = vector.extract_strided_slice %230 {offsets = [0, 96], sizes = [8, 32], strides = [1, 1]} : vector<8x128xf32> to vector<8x32xf32>
    %235 = arith.mulf %232, %220 : vector<8x32xf32>
    %236 = arith.mulf %231, %233 : vector<8x32xf32>
    %237 = arith.addf %235, %236 : vector<8x32xf32>
    %238 = math.tanh %237 : vector<8x32xf32>
    %239 = arith.mulf %234, %238 : vector<8x32xf32>
    %cst_39 = arith.constant dense<0.000000e+00> : vector<8x128xf32>
    %240 = tpu.matmul %239, %164, %cst_39 {dimension_numbers = #tpu.dot_dimension_numbers<[1], [0], [0], [1], [0, 0, 1, 1], [], []>} : vector<8x32xf32>, vector<32x128xf32>, vector<8x128xf32> -> vector<8x128xf32>
    %241 = vector.extract_strided_slice %169 {offsets = [32, 0], sizes = [8, 128], strides = [1, 1]} : vector<64x128xf32> to vector<8x128xf32>
    %242 = arith.addf %240, %241 : vector<8x128xf32>
    %243 = math.tanh %242 : vector<8x128xf32>
    %244 = vector.broadcast %8 : vector<1x128xf32> to vector<8x128xf32>
    %245 = arith.mulf %243, %244 : vector<8x128xf32>
    %246 = vector.broadcast %11 : vector<1x128xf32> to vector<8x128xf32>
    %247 = arith.addf %245, %246 : vector<8x128xf32>
    %248 = vector.extract_strided_slice %247 {offsets = [0, 0], sizes = [8, 32], strides = [1, 1]} : vector<8x128xf32> to vector<8x32xf32>
    %249 = vector.extract_strided_slice %247 {offsets = [0, 32], sizes = [8, 32], strides = [1, 1]} : vector<8x128xf32> to vector<8x32xf32>
    %250 = vector.extract_strided_slice %247 {offsets = [0, 64], sizes = [8, 32], strides = [1, 1]} : vector<8x128xf32> to vector<8x32xf32>
    %251 = vector.extract_strided_slice %247 {offsets = [0, 96], sizes = [8, 32], strides = [1, 1]} : vector<8x128xf32> to vector<8x32xf32>
    %252 = arith.mulf %249, %237 : vector<8x32xf32>
    %253 = arith.mulf %248, %250 : vector<8x32xf32>
    %254 = arith.addf %252, %253 : vector<8x32xf32>
    %255 = math.tanh %254 : vector<8x32xf32>
    %256 = arith.mulf %251, %255 : vector<8x32xf32>
    %cst_40 = arith.constant dense<0.000000e+00> : vector<8x128xf32>
    %257 = tpu.matmul %256, %164, %cst_40 {dimension_numbers = #tpu.dot_dimension_numbers<[1], [0], [0], [1], [0, 0, 1, 1], [], []>} : vector<8x32xf32>, vector<32x128xf32>, vector<8x128xf32> -> vector<8x128xf32>
    %258 = vector.extract_strided_slice %169 {offsets = [40, 0], sizes = [8, 128], strides = [1, 1]} : vector<64x128xf32> to vector<8x128xf32>
    %259 = arith.addf %257, %258 : vector<8x128xf32>
    %260 = math.tanh %259 : vector<8x128xf32>
    %261 = vector.broadcast %8 : vector<1x128xf32> to vector<8x128xf32>
    %262 = arith.mulf %260, %261 : vector<8x128xf32>
    %263 = vector.broadcast %11 : vector<1x128xf32> to vector<8x128xf32>
    %264 = arith.addf %262, %263 : vector<8x128xf32>
    %265 = vector.extract_strided_slice %264 {offsets = [0, 0], sizes = [8, 32], strides = [1, 1]} : vector<8x128xf32> to vector<8x32xf32>
    %266 = vector.extract_strided_slice %264 {offsets = [0, 32], sizes = [8, 32], strides = [1, 1]} : vector<8x128xf32> to vector<8x32xf32>
    %267 = vector.extract_strided_slice %264 {offsets = [0, 64], sizes = [8, 32], strides = [1, 1]} : vector<8x128xf32> to vector<8x32xf32>
    %268 = vector.extract_strided_slice %264 {offsets = [0, 96], sizes = [8, 32], strides = [1, 1]} : vector<8x128xf32> to vector<8x32xf32>
    %269 = arith.mulf %266, %254 : vector<8x32xf32>
    %270 = arith.mulf %265, %267 : vector<8x32xf32>
    %271 = arith.addf %269, %270 : vector<8x32xf32>
    %272 = math.tanh %271 : vector<8x32xf32>
    %273 = arith.mulf %268, %272 : vector<8x32xf32>
    %cst_41 = arith.constant dense<0.000000e+00> : vector<8x128xf32>
    %274 = tpu.matmul %273, %164, %cst_41 {dimension_numbers = #tpu.dot_dimension_numbers<[1], [0], [0], [1], [0, 0, 1, 1], [], []>} : vector<8x32xf32>, vector<32x128xf32>, vector<8x128xf32> -> vector<8x128xf32>
    %275 = vector.extract_strided_slice %169 {offsets = [48, 0], sizes = [8, 128], strides = [1, 1]} : vector<64x128xf32> to vector<8x128xf32>
    %276 = arith.addf %274, %275 : vector<8x128xf32>
    %277 = math.tanh %276 : vector<8x128xf32>
    %278 = vector.broadcast %8 : vector<1x128xf32> to vector<8x128xf32>
    %279 = arith.mulf %277, %278 : vector<8x128xf32>
    %280 = vector.broadcast %11 : vector<1x128xf32> to vector<8x128xf32>
    %281 = arith.addf %279, %280 : vector<8x128xf32>
    %282 = vector.extract_strided_slice %281 {offsets = [0, 0], sizes = [8, 32], strides = [1, 1]} : vector<8x128xf32> to vector<8x32xf32>
    %283 = vector.extract_strided_slice %281 {offsets = [0, 32], sizes = [8, 32], strides = [1, 1]} : vector<8x128xf32> to vector<8x32xf32>
    %284 = vector.extract_strided_slice %281 {offsets = [0, 64], sizes = [8, 32], strides = [1, 1]} : vector<8x128xf32> to vector<8x32xf32>
    %285 = vector.extract_strided_slice %281 {offsets = [0, 96], sizes = [8, 32], strides = [1, 1]} : vector<8x128xf32> to vector<8x32xf32>
    %286 = arith.mulf %283, %271 : vector<8x32xf32>
    %287 = arith.mulf %282, %284 : vector<8x32xf32>
    %288 = arith.addf %286, %287 : vector<8x32xf32>
    %289 = math.tanh %288 : vector<8x32xf32>
    %290 = arith.mulf %285, %289 : vector<8x32xf32>
    %cst_42 = arith.constant dense<0.000000e+00> : vector<8x128xf32>
    %291 = tpu.matmul %290, %164, %cst_42 {dimension_numbers = #tpu.dot_dimension_numbers<[1], [0], [0], [1], [0, 0, 1, 1], [], []>} : vector<8x32xf32>, vector<32x128xf32>, vector<8x128xf32> -> vector<8x128xf32>
    %292 = vector.extract_strided_slice %169 {offsets = [56, 0], sizes = [8, 128], strides = [1, 1]} : vector<64x128xf32> to vector<8x128xf32>
    %293 = arith.addf %291, %292 : vector<8x128xf32>
    %294 = math.tanh %293 : vector<8x128xf32>
    %295 = vector.broadcast %8 : vector<1x128xf32> to vector<8x128xf32>
    %296 = arith.mulf %294, %295 : vector<8x128xf32>
    %297 = vector.broadcast %11 : vector<1x128xf32> to vector<8x128xf32>
    %298 = arith.addf %296, %297 : vector<8x128xf32>
    %299 = vector.extract_strided_slice %298 {offsets = [0, 0], sizes = [8, 32], strides = [1, 1]} : vector<8x128xf32> to vector<8x32xf32>
    %300 = vector.extract_strided_slice %298 {offsets = [0, 32], sizes = [8, 32], strides = [1, 1]} : vector<8x128xf32> to vector<8x32xf32>
    %301 = vector.extract_strided_slice %298 {offsets = [0, 64], sizes = [8, 32], strides = [1, 1]} : vector<8x128xf32> to vector<8x32xf32>
    %302 = vector.extract_strided_slice %298 {offsets = [0, 96], sizes = [8, 32], strides = [1, 1]} : vector<8x128xf32> to vector<8x32xf32>
    %303 = arith.mulf %300, %288 : vector<8x32xf32>
    %304 = arith.mulf %299, %301 : vector<8x32xf32>
    %305 = arith.addf %303, %304 : vector<8x32xf32>
    %306 = math.tanh %305 : vector<8x32xf32>
    %307 = arith.mulf %302, %306 : vector<8x32xf32>
    %308 = tpu.concatenate %188, %205, %222, %239, %256, %273, %290, %307 in 0 : vector<8x32xf32>, vector<8x32xf32>, vector<8x32xf32>, vector<8x32xf32>, vector<8x32xf32>, vector<8x32xf32>, vector<8x32xf32>, vector<8x32xf32> -> vector<64x32xf32>
    %c2 = arith.constant 2 : index
    %c0_43 = arith.constant 0 : index
    %c0_44 = arith.constant 0 : index
    %309 = vector.load %arg1[%c2, %c0_43, %c0_44] : memref<3x32x128xf32, #tpu.memory_space<vmem>>, vector<1x32x128xf32>
    %310 = vector.shape_cast %309 : vector<1x32x128xf32> to vector<32x128xf32>
    %c2_45 = arith.constant 2 : index
    %c0_46 = arith.constant 0 : index
    %c0_47 = arith.constant 0 : index
    %311 = vector.load %arg2[%c2_45, %c0_46, %c0_47] : memref<3x32x128xf32, #tpu.memory_space<vmem>>, vector<1x32x128xf32>
    %312 = vector.shape_cast %311 : vector<1x32x128xf32> to vector<32x128xf32>
    %c2_48 = arith.constant 2 : index
    %c0_49 = arith.constant 0 : index
    %c0_50 = arith.constant 0 : index
    %313 = vector.load %arg3[%c2_48, %c0_49, %c0_50] : memref<3x1x128xf32, #tpu.memory_space<vmem>>, vector<1x1x128xf32>
    %314 = vector.shape_cast %313 : vector<1x1x128xf32> to vector<1x128xf32>
    %cst_51 = arith.constant dense<0.000000e+00> : vector<64x128xf32>
    %315 = tpu.matmul %308, %310, %cst_51 {dimension_numbers = #tpu.dot_dimension_numbers<[1], [0], [0], [1], [0, 0, 1, 1], [], []>} : vector<64x32xf32>, vector<32x128xf32>, vector<64x128xf32> -> vector<64x128xf32>
    %316 = vector.broadcast %314 : vector<1x128xf32> to vector<64x128xf32>
    %317 = arith.addf %315, %316 : vector<64x128xf32>
    %cst_52 = arith.constant 0.000000e+00 : f32
    %318 = vector.broadcast %cst_52 : f32 to vector<8x32xf32>
    %cst_53 = arith.constant 0.000000e+00 : f32
    %319 = vector.broadcast %cst_53 : f32 to vector<8x32xf32>
    %cst_54 = arith.constant dense<0.000000e+00> : vector<8x128xf32>
    %320 = tpu.matmul %318, %312, %cst_54 {dimension_numbers = #tpu.dot_dimension_numbers<[1], [0], [0], [1], [0, 0, 1, 1], [], []>} : vector<8x32xf32>, vector<32x128xf32>, vector<8x128xf32> -> vector<8x128xf32>
    %321 = vector.extract_strided_slice %317 {offsets = [0, 0], sizes = [8, 128], strides = [1, 1]} : vector<64x128xf32> to vector<8x128xf32>
    %322 = arith.addf %320, %321 : vector<8x128xf32>
    %323 = math.tanh %322 : vector<8x128xf32>
    %324 = vector.broadcast %8 : vector<1x128xf32> to vector<8x128xf32>
    %325 = arith.mulf %323, %324 : vector<8x128xf32>
    %326 = vector.broadcast %11 : vector<1x128xf32> to vector<8x128xf32>
    %327 = arith.addf %325, %326 : vector<8x128xf32>
    %328 = vector.extract_strided_slice %327 {offsets = [0, 0], sizes = [8, 32], strides = [1, 1]} : vector<8x128xf32> to vector<8x32xf32>
    %329 = vector.extract_strided_slice %327 {offsets = [0, 32], sizes = [8, 32], strides = [1, 1]} : vector<8x128xf32> to vector<8x32xf32>
    %330 = vector.extract_strided_slice %327 {offsets = [0, 64], sizes = [8, 32], strides = [1, 1]} : vector<8x128xf32> to vector<8x32xf32>
    %331 = vector.extract_strided_slice %327 {offsets = [0, 96], sizes = [8, 32], strides = [1, 1]} : vector<8x128xf32> to vector<8x32xf32>
    %332 = arith.mulf %329, %319 : vector<8x32xf32>
    %333 = arith.mulf %328, %330 : vector<8x32xf32>
    %334 = arith.addf %332, %333 : vector<8x32xf32>
    %335 = math.tanh %334 : vector<8x32xf32>
    %336 = arith.mulf %331, %335 : vector<8x32xf32>
    %cst_55 = arith.constant dense<0.000000e+00> : vector<8x128xf32>
    %337 = tpu.matmul %336, %312, %cst_55 {dimension_numbers = #tpu.dot_dimension_numbers<[1], [0], [0], [1], [0, 0, 1, 1], [], []>} : vector<8x32xf32>, vector<32x128xf32>, vector<8x128xf32> -> vector<8x128xf32>
    %338 = vector.extract_strided_slice %317 {offsets = [8, 0], sizes = [8, 128], strides = [1, 1]} : vector<64x128xf32> to vector<8x128xf32>
    %339 = arith.addf %337, %338 : vector<8x128xf32>
    %340 = math.tanh %339 : vector<8x128xf32>
    %341 = vector.broadcast %8 : vector<1x128xf32> to vector<8x128xf32>
    %342 = arith.mulf %340, %341 : vector<8x128xf32>
    %343 = vector.broadcast %11 : vector<1x128xf32> to vector<8x128xf32>
    %344 = arith.addf %342, %343 : vector<8x128xf32>
    %345 = vector.extract_strided_slice %344 {offsets = [0, 0], sizes = [8, 32], strides = [1, 1]} : vector<8x128xf32> to vector<8x32xf32>
    %346 = vector.extract_strided_slice %344 {offsets = [0, 32], sizes = [8, 32], strides = [1, 1]} : vector<8x128xf32> to vector<8x32xf32>
    %347 = vector.extract_strided_slice %344 {offsets = [0, 64], sizes = [8, 32], strides = [1, 1]} : vector<8x128xf32> to vector<8x32xf32>
    %348 = vector.extract_strided_slice %344 {offsets = [0, 96], sizes = [8, 32], strides = [1, 1]} : vector<8x128xf32> to vector<8x32xf32>
    %349 = arith.mulf %346, %334 : vector<8x32xf32>
    %350 = arith.mulf %345, %347 : vector<8x32xf32>
    %351 = arith.addf %349, %350 : vector<8x32xf32>
    %352 = math.tanh %351 : vector<8x32xf32>
    %353 = arith.mulf %348, %352 : vector<8x32xf32>
    %cst_56 = arith.constant dense<0.000000e+00> : vector<8x128xf32>
    %354 = tpu.matmul %353, %312, %cst_56 {dimension_numbers = #tpu.dot_dimension_numbers<[1], [0], [0], [1], [0, 0, 1, 1], [], []>} : vector<8x32xf32>, vector<32x128xf32>, vector<8x128xf32> -> vector<8x128xf32>
    %355 = vector.extract_strided_slice %317 {offsets = [16, 0], sizes = [8, 128], strides = [1, 1]} : vector<64x128xf32> to vector<8x128xf32>
    %356 = arith.addf %354, %355 : vector<8x128xf32>
    %357 = math.tanh %356 : vector<8x128xf32>
    %358 = vector.broadcast %8 : vector<1x128xf32> to vector<8x128xf32>
    %359 = arith.mulf %357, %358 : vector<8x128xf32>
    %360 = vector.broadcast %11 : vector<1x128xf32> to vector<8x128xf32>
    %361 = arith.addf %359, %360 : vector<8x128xf32>
    %362 = vector.extract_strided_slice %361 {offsets = [0, 0], sizes = [8, 32], strides = [1, 1]} : vector<8x128xf32> to vector<8x32xf32>
    %363 = vector.extract_strided_slice %361 {offsets = [0, 32], sizes = [8, 32], strides = [1, 1]} : vector<8x128xf32> to vector<8x32xf32>
    %364 = vector.extract_strided_slice %361 {offsets = [0, 64], sizes = [8, 32], strides = [1, 1]} : vector<8x128xf32> to vector<8x32xf32>
    %365 = vector.extract_strided_slice %361 {offsets = [0, 96], sizes = [8, 32], strides = [1, 1]} : vector<8x128xf32> to vector<8x32xf32>
    %366 = arith.mulf %363, %351 : vector<8x32xf32>
    %367 = arith.mulf %362, %364 : vector<8x32xf32>
    %368 = arith.addf %366, %367 : vector<8x32xf32>
    %369 = math.tanh %368 : vector<8x32xf32>
    %370 = arith.mulf %365, %369 : vector<8x32xf32>
    %cst_57 = arith.constant dense<0.000000e+00> : vector<8x128xf32>
    %371 = tpu.matmul %370, %312, %cst_57 {dimension_numbers = #tpu.dot_dimension_numbers<[1], [0], [0], [1], [0, 0, 1, 1], [], []>} : vector<8x32xf32>, vector<32x128xf32>, vector<8x128xf32> -> vector<8x128xf32>
    %372 = vector.extract_strided_slice %317 {offsets = [24, 0], sizes = [8, 128], strides = [1, 1]} : vector<64x128xf32> to vector<8x128xf32>
    %373 = arith.addf %371, %372 : vector<8x128xf32>
    %374 = math.tanh %373 : vector<8x128xf32>
    %375 = vector.broadcast %8 : vector<1x128xf32> to vector<8x128xf32>
    %376 = arith.mulf %374, %375 : vector<8x128xf32>
    %377 = vector.broadcast %11 : vector<1x128xf32> to vector<8x128xf32>
    %378 = arith.addf %376, %377 : vector<8x128xf32>
    %379 = vector.extract_strided_slice %378 {offsets = [0, 0], sizes = [8, 32], strides = [1, 1]} : vector<8x128xf32> to vector<8x32xf32>
    %380 = vector.extract_strided_slice %378 {offsets = [0, 32], sizes = [8, 32], strides = [1, 1]} : vector<8x128xf32> to vector<8x32xf32>
    %381 = vector.extract_strided_slice %378 {offsets = [0, 64], sizes = [8, 32], strides = [1, 1]} : vector<8x128xf32> to vector<8x32xf32>
    %382 = vector.extract_strided_slice %378 {offsets = [0, 96], sizes = [8, 32], strides = [1, 1]} : vector<8x128xf32> to vector<8x32xf32>
    %383 = arith.mulf %380, %368 : vector<8x32xf32>
    %384 = arith.mulf %379, %381 : vector<8x32xf32>
    %385 = arith.addf %383, %384 : vector<8x32xf32>
    %386 = math.tanh %385 : vector<8x32xf32>
    %387 = arith.mulf %382, %386 : vector<8x32xf32>
    %cst_58 = arith.constant dense<0.000000e+00> : vector<8x128xf32>
    %388 = tpu.matmul %387, %312, %cst_58 {dimension_numbers = #tpu.dot_dimension_numbers<[1], [0], [0], [1], [0, 0, 1, 1], [], []>} : vector<8x32xf32>, vector<32x128xf32>, vector<8x128xf32> -> vector<8x128xf32>
    %389 = vector.extract_strided_slice %317 {offsets = [32, 0], sizes = [8, 128], strides = [1, 1]} : vector<64x128xf32> to vector<8x128xf32>
    %390 = arith.addf %388, %389 : vector<8x128xf32>
    %391 = math.tanh %390 : vector<8x128xf32>
    %392 = vector.broadcast %8 : vector<1x128xf32> to vector<8x128xf32>
    %393 = arith.mulf %391, %392 : vector<8x128xf32>
    %394 = vector.broadcast %11 : vector<1x128xf32> to vector<8x128xf32>
    %395 = arith.addf %393, %394 : vector<8x128xf32>
    %396 = vector.extract_strided_slice %395 {offsets = [0, 0], sizes = [8, 32], strides = [1, 1]} : vector<8x128xf32> to vector<8x32xf32>
    %397 = vector.extract_strided_slice %395 {offsets = [0, 32], sizes = [8, 32], strides = [1, 1]} : vector<8x128xf32> to vector<8x32xf32>
    %398 = vector.extract_strided_slice %395 {offsets = [0, 64], sizes = [8, 32], strides = [1, 1]} : vector<8x128xf32> to vector<8x32xf32>
    %399 = vector.extract_strided_slice %395 {offsets = [0, 96], sizes = [8, 32], strides = [1, 1]} : vector<8x128xf32> to vector<8x32xf32>
    %400 = arith.mulf %397, %385 : vector<8x32xf32>
    %401 = arith.mulf %396, %398 : vector<8x32xf32>
    %402 = arith.addf %400, %401 : vector<8x32xf32>
    %403 = math.tanh %402 : vector<8x32xf32>
    %404 = arith.mulf %399, %403 : vector<8x32xf32>
    %cst_59 = arith.constant dense<0.000000e+00> : vector<8x128xf32>
    %405 = tpu.matmul %404, %312, %cst_59 {dimension_numbers = #tpu.dot_dimension_numbers<[1], [0], [0], [1], [0, 0, 1, 1], [], []>} : vector<8x32xf32>, vector<32x128xf32>, vector<8x128xf32> -> vector<8x128xf32>
    %406 = vector.extract_strided_slice %317 {offsets = [40, 0], sizes = [8, 128], strides = [1, 1]} : vector<64x128xf32> to vector<8x128xf32>
    %407 = arith.addf %405, %406 : vector<8x128xf32>
    %408 = math.tanh %407 : vector<8x128xf32>
    %409 = vector.broadcast %8 : vector<1x128xf32> to vector<8x128xf32>
    %410 = arith.mulf %408, %409 : vector<8x128xf32>
    %411 = vector.broadcast %11 : vector<1x128xf32> to vector<8x128xf32>
    %412 = arith.addf %410, %411 : vector<8x128xf32>
    %413 = vector.extract_strided_slice %412 {offsets = [0, 0], sizes = [8, 32], strides = [1, 1]} : vector<8x128xf32> to vector<8x32xf32>
    %414 = vector.extract_strided_slice %412 {offsets = [0, 32], sizes = [8, 32], strides = [1, 1]} : vector<8x128xf32> to vector<8x32xf32>
    %415 = vector.extract_strided_slice %412 {offsets = [0, 64], sizes = [8, 32], strides = [1, 1]} : vector<8x128xf32> to vector<8x32xf32>
    %416 = vector.extract_strided_slice %412 {offsets = [0, 96], sizes = [8, 32], strides = [1, 1]} : vector<8x128xf32> to vector<8x32xf32>
    %417 = arith.mulf %414, %402 : vector<8x32xf32>
    %418 = arith.mulf %413, %415 : vector<8x32xf32>
    %419 = arith.addf %417, %418 : vector<8x32xf32>
    %420 = math.tanh %419 : vector<8x32xf32>
    %421 = arith.mulf %416, %420 : vector<8x32xf32>
    %cst_60 = arith.constant dense<0.000000e+00> : vector<8x128xf32>
    %422 = tpu.matmul %421, %312, %cst_60 {dimension_numbers = #tpu.dot_dimension_numbers<[1], [0], [0], [1], [0, 0, 1, 1], [], []>} : vector<8x32xf32>, vector<32x128xf32>, vector<8x128xf32> -> vector<8x128xf32>
    %423 = vector.extract_strided_slice %317 {offsets = [48, 0], sizes = [8, 128], strides = [1, 1]} : vector<64x128xf32> to vector<8x128xf32>
    %424 = arith.addf %422, %423 : vector<8x128xf32>
    %425 = math.tanh %424 : vector<8x128xf32>
    %426 = vector.broadcast %8 : vector<1x128xf32> to vector<8x128xf32>
    %427 = arith.mulf %425, %426 : vector<8x128xf32>
    %428 = vector.broadcast %11 : vector<1x128xf32> to vector<8x128xf32>
    %429 = arith.addf %427, %428 : vector<8x128xf32>
    %430 = vector.extract_strided_slice %429 {offsets = [0, 0], sizes = [8, 32], strides = [1, 1]} : vector<8x128xf32> to vector<8x32xf32>
    %431 = vector.extract_strided_slice %429 {offsets = [0, 32], sizes = [8, 32], strides = [1, 1]} : vector<8x128xf32> to vector<8x32xf32>
    %432 = vector.extract_strided_slice %429 {offsets = [0, 64], sizes = [8, 32], strides = [1, 1]} : vector<8x128xf32> to vector<8x32xf32>
    %433 = vector.extract_strided_slice %429 {offsets = [0, 96], sizes = [8, 32], strides = [1, 1]} : vector<8x128xf32> to vector<8x32xf32>
    %434 = arith.mulf %431, %419 : vector<8x32xf32>
    %435 = arith.mulf %430, %432 : vector<8x32xf32>
    %436 = arith.addf %434, %435 : vector<8x32xf32>
    %437 = math.tanh %436 : vector<8x32xf32>
    %438 = arith.mulf %433, %437 : vector<8x32xf32>
    %cst_61 = arith.constant dense<0.000000e+00> : vector<8x128xf32>
    %439 = tpu.matmul %438, %312, %cst_61 {dimension_numbers = #tpu.dot_dimension_numbers<[1], [0], [0], [1], [0, 0, 1, 1], [], []>} : vector<8x32xf32>, vector<32x128xf32>, vector<8x128xf32> -> vector<8x128xf32>
    %440 = vector.extract_strided_slice %317 {offsets = [56, 0], sizes = [8, 128], strides = [1, 1]} : vector<64x128xf32> to vector<8x128xf32>
    %441 = arith.addf %439, %440 : vector<8x128xf32>
    %442 = math.tanh %441 : vector<8x128xf32>
    %443 = vector.broadcast %8 : vector<1x128xf32> to vector<8x128xf32>
    %444 = arith.mulf %442, %443 : vector<8x128xf32>
    %445 = vector.broadcast %11 : vector<1x128xf32> to vector<8x128xf32>
    %446 = arith.addf %444, %445 : vector<8x128xf32>
    %447 = vector.extract_strided_slice %446 {offsets = [0, 0], sizes = [8, 32], strides = [1, 1]} : vector<8x128xf32> to vector<8x32xf32>
    %448 = vector.extract_strided_slice %446 {offsets = [0, 32], sizes = [8, 32], strides = [1, 1]} : vector<8x128xf32> to vector<8x32xf32>
    %449 = vector.extract_strided_slice %446 {offsets = [0, 64], sizes = [8, 32], strides = [1, 1]} : vector<8x128xf32> to vector<8x32xf32>
    %450 = vector.extract_strided_slice %446 {offsets = [0, 96], sizes = [8, 32], strides = [1, 1]} : vector<8x128xf32> to vector<8x32xf32>
    %451 = arith.mulf %448, %436 : vector<8x32xf32>
    %452 = arith.mulf %447, %449 : vector<8x32xf32>
    %453 = arith.addf %451, %452 : vector<8x32xf32>
    %454 = math.tanh %453 : vector<8x32xf32>
    %455 = arith.mulf %450, %454 : vector<8x32xf32>
    %c0_62 = arith.constant 0 : index
    %c0_63 = arith.constant 0 : index
    %456 = vector.load %arg4[%c0_62, %c0_63] : memref<32x128xf32, #tpu.memory_space<vmem>>, vector<32x128xf32>
    %cst_64 = arith.constant dense<0.000000e+00> : vector<8x128xf32>
    %457 = tpu.matmul %455, %456, %cst_64 {dimension_numbers = #tpu.dot_dimension_numbers<[1], [0], [0], [1], [0, 0, 1, 1], [], []>} : vector<8x32xf32>, vector<32x128xf32>, vector<8x128xf32> -> vector<8x128xf32>
    %c0_65 = arith.constant 0 : index
    %c0_66 = arith.constant 0 : index
    %458 = vector.load %arg5[%c0_65, %c0_66] : memref<1x128xf32, #tpu.memory_space<vmem>>, vector<1x128xf32>
    %459 = vector.broadcast %458 : vector<1x128xf32> to vector<8x128xf32>
    %460 = arith.addf %457, %459 : vector<8x128xf32>
    %c0_67 = arith.constant 0 : index
    %c0_68 = arith.constant 0 : index
    %461 = vector.load %arg6[%c0_67, %c0_68] : memref<8x128xf32, #tpu.memory_space<vmem>>, vector<8x128xf32>
    tpu.vector_store %arg6[%c0_67, %c0_68], %460 {strides = array<i32>} : memref<8x128xf32, #tpu.memory_space<vmem>>, vector<8x128xf32>,
    return
  }
}

</mosaic_0001>

<llo_original>
// kernel: lstm_model_forward.1
$region0: #{lstm_model_forward.1}
  #allocation0 [shape = 'u32[]', space=smem, size = 0x4, offset = 0x4, fixed_abs, tag = 'smem constant byte address 0x4 - core index']
  #allocation1 [shape = 'u32[72,128]{1,0:T(1,128)}', space=vmem, size = 0x9000, scoped, tag = 'internal scratch']
  %s0 = inlined_call_operand.vmem [shape: f32[64,32], index: 0, kind: input, shape index: {}]
  %s1 = inlined_call_operand.vmem [shape: f32[3,32,128], index: 1, kind: input, shape index: {}]
  %s2 = inlined_call_operand.vmem [shape: f32[3,32,128], index: 2, kind: input, shape index: {}]
  %s3 = inlined_call_operand.vmem [shape: f32[3,1,128], index: 3, kind: input, shape index: {}]
  %s4 = inlined_call_operand.vmem [shape: f32[32,128], index: 4, kind: input, shape index: {}]
  %s5 = inlined_call_operand.vmem [shape: f32[1,128], index: 5, kind: input, shape index: {}]
  %s6 = inlined_call_operand.vmem [shape: f32[8,128], index: 6, kind: output, shape index: {}]
  %s7 = sld [smem:[#allocation0]]
  $region34: #{lstm_model_forward.1} parent=0
    _
  %s9 = ssub.s32 1, %s7
  %s10 = scalar_select 0, %s9, %s7
  // Predicated region
  $region2: #{lstm_model_forward.1} parent=0 // pred_check
    _
  $region3: #{lstm_model_forward.1} parent=0 // pred_check_branch
    %12 = sbr.rel (0) target = $region5
  $region4: #{lstm_model_forward.1} parent=0 // pred_region
    _
  $region5: #{lstm_model_forward.1} parent=0 // pred_fallthru
    _
  // Predicated region
  $region6: #{lstm_model_forward.1} parent=0 // pred_check
    _
  $region7: #{lstm_model_forward.1} parent=0 // pred_check_branch
    %14 = sbr.rel (0) target = $region9
  $region8: #{lstm_model_forward.1} parent=0 // pred_region
    _
  $region9: #{lstm_model_forward.1} parent=0 // pred_fallthru
    _
  // Predicated region
  $region10: #{lstm_model_forward.1} parent=0 // pred_check
    _
  $region11: #{lstm_model_forward.1} parent=0 // pred_check_branch
    %16 = sbr.rel (0) target = $region13
  $region12: #{lstm_model_forward.1} parent=0 // pred_region
    _
  $region13: #{lstm_model_forward.1} parent=0 // pred_fallthru
    _
  // Predicated region
  $region14: #{lstm_model_forward.1} parent=0 // pred_check
    _
  $region15: #{lstm_model_forward.1} parent=0 // pred_check_branch
    %18 = sbr.rel (0) target = $region17
  $region16: #{lstm_model_forward.1} parent=0 // pred_region
    _
  $region17: #{lstm_model_forward.1} parent=0 // pred_fallthru
    _
  // Predicated region
  $region18: #{lstm_model_forward.1} parent=0 // pred_check
    _
  $region19: #{lstm_model_forward.1} parent=0 // pred_check_branch
    %20 = sbr.rel (0) target = $region21
  $region20: #{lstm_model_forward.1} parent=0 // pred_region
    _
  $region21: #{lstm_model_forward.1} parent=0 // pred_fallthru
    _
  // Predicated region
  $region22: #{lstm_model_forward.1} parent=0 // pred_check
    _
  $region23: #{lstm_model_forward.1} parent=0 // pred_check_branch
    %22 = sbr.rel (0) target = $region25
  $region24: #{lstm_model_forward.1} parent=0 // pred_region
    _
  $region25: #{lstm_model_forward.1} parent=0 // pred_fallthru
    _
  %v23 = vlaneseq
  %v24 = vand.u32 %v23, 127
  %vm25 = vcmp.ge.s32.totalorder %v24, 64
  %vm26 = vcmp.lt.s32.totalorder %v24, 96
  %vm27 = vmand %vm25, %vm26
  %v28 = vsel %vm27, 1.0, 0.5
  %v29 = vsel %vm27, 0.0, 0.5
  %v30 = vld [vmem:[%s0] sm:$0xff]
  %v31 = vld [vmem:[%s0 + $0x8] sm:$0xff]
  %v32 = vld [vmem:[%s0 + $0x10] sm:$0xff]
  %v33 = vld [vmem:[%s0 + $0x18] sm:$0xff]
  %v34 = vld [vmem:[%s0 + $0x20] sm:$0xff]
  %v35 = vld [vmem:[%s0 + $0x28] sm:$0xff]
  %v36 = vld [vmem:[%s0 + $0x30] sm:$0xff]
  %v37 = vld [vmem:[%s0 + $0x38] sm:$0xff]
  %v38 = vld [vmem:[%s1] sm:$0xff]
  %v39 = vld [vmem:[%s1 + $0x8] sm:$0xff]
  %v40 = vld [vmem:[%s1 + $0x10] sm:$0xff]
  %v41 = vld [vmem:[%s1 + $0x18] sm:$0xff]
  %v42 = vld [vmem:[%s2] sm:$0xff]
  %v43 = vld [vmem:[%s2 + $0x8] sm:$0xff]
  %v44 = vld [vmem:[%s2 + $0x10] sm:$0xff]
  %v45 = vld [vmem:[%s2 + $0x18] sm:$0xff]
  %v46 = vld [vmem:[%s3] sm:$0x1]
  %v48 = vperm.slane %v46, 0
  %vm50 = vcmask 261120
  %v52 = vsel %vm50, %v30, 0
  %v55 = vsel %vm50, %v31, 0
  %v58 = vsel %vm50, %v32, 0
  %v61 = vsel %vm50, %v33, 0
  %v64 = vsel %vm50, %v34, 0
  %v67 = vsel %vm50, %v35, 0
  %v70 = vsel %vm50, %v36, 0
  %v73 = vsel %vm50, %v37, 0
  %75 = vmatpush.msra.mxu0 0.0
  %76 = vmatpush.msra.mxu0 0.0
  %77 = vmatpush.msra.mxu0 0.0
  %78 = vmatpush.msra.mxu0 0.0
  %79 = vmatpush.msra.mxu0 0.0
  %80 = vmatpush.msra.mxu0 0.0
  %81 = vmatpush.msra.mxu0 0.0
  %82 = vmatpush.msra.mxu0 0.0
  %83 = vmatpush.msra.mxu0 0.0
  %84 = vmatpush.msra.mxu0 0.0
  %85 = vmatpush.msra.mxu0 0.0
  %86 = vmatpush.msra.mxu0 0.0
  %87 = vmatpush.msra.mxu0 %v41
  %88 = vmatpush.msra.mxu0 %v40
  %89 = vmatpush.msra.mxu0 %v39
  %90 = vmatpush.msra.mxu0 %v38
  %91 = vmatmul.f32.gmra.mxu0 %v52
  %v92 = vpop.f32.mrf.mxu0
  %v93 = vadd.f32 %v48, %v92
  %94 = vmatmul.f32.gmra.mxu0 %v55
  %v95 = vpop.f32.mrf.mxu0
  %v96 = vadd.f32 %v48, %v95
  %97 = vmatmul.f32.gmra.mxu0 %v58
  %v98 = vpop.f32.mrf.mxu0
  %v99 = vadd.f32 %v48, %v98
  %100 = vmatmul.f32.gmra.mxu0 %v61
  %v101 = vpop.f32.mrf.mxu0
  %v102 = vadd.f32 %v48, %v101
  %103 = vmatmul.f32.gmra.mxu0 %v64
  %v104 = vpop.f32.mrf.mxu0
  %v105 = vadd.f32 %v48, %v104
  %106 = vmatmul.f32.gmra.mxu0 %v67
  %v107 = vpop.f32.mrf.mxu0
  %v108 = vadd.f32 %v48, %v107
  %109 = vmatmul.f32.gmra.mxu0 %v70
  %v110 = vpop.f32.mrf.mxu0
  %v111 = vadd.f32 %v48, %v110
  %112 = vmatmul.f32.gmra.mxu0 %v73
  %v113 = vpop.f32.mrf.mxu0
  %v114 = vadd.f32 %v48, %v113
  %115 = vdwg.mxu0
  %v117 = vsel %vm50, 0.0, 0
  %119 = vmatpush.msra.mxu0 0.0
  %120 = vmatpush.msra.mxu0 0.0
  %121 = vmatpush.msra.mxu0 0.0
  %122 = vmatpush.msra.mxu0 0.0
  %123 = vmatpush.msra.mxu0 0.0
  %124 = vmatpush.msra.mxu0 0.0
  %125 = vmatpush.msra.mxu0 0.0
  %126 = vmatpush.msra.mxu0 0.0
  %127 = vmatpush.msra.mxu0 0.0
  %128 = vmatpush.msra.mxu0 0.0
  %129 = vmatpush.msra.mxu0 0.0
  %130 = vmatpush.msra.mxu0 0.0
  %131 = vmatpush.msra.mxu0 %v45
  %132 = vmatpush.msra.mxu0 %v44
  %133 = vmatpush.msra.mxu0 %v43
  %134 = vmatpush.msra.mxu0 %v42
  %135 = vmatmul.f32.gmra.mxu0 %v117
  %v136 = vpop.f32.mrf.mxu0
  %v137 = vadd.f32 %v93, %v136
  %138 = vdwg.mxu0
  %v139 = vtanh.pop %v137
  %v140 = vmul.f32 %v139, %v28
  %v141 = vadd.f32 %v140, %v29
  %v142 = vmul.f32 %v141, 0.0
  %144 = vrot.lane.b32.xlu0 %v141, 64
  %v145 = vpop.permute.xlu0 %144
  %v147 = vmul.f32 %v141, %v145
  %149 = vrot.lane.b32.xlu0 %v147, 32
  %v150 = vpop.permute.xlu0 %149
  %v152 = vadd.f32 %v142, %v150
  %v153 = vtanh.pop %v152
  %155 = vrot.lane.b32.xlu0 %v153, 64
  %v156 = vpop.permute.xlu0 %155
  %v158 = vmul.f32 %v141, %v156
  %160 = vrot.lane.b32.xlu0 %v158, 32
  %v161 = vpop.permute.xlu0 %160
  %v162 = vsel %vm50, %v161, 0
  %164 = vmatpush.msra.mxu0 0.0
  %165 = vmatpush.msra.mxu0 0.0
  %166 = vmatpush.msra.mxu0 0.0
  %167 = vmatpush.msra.mxu0 0.0
  %168 = vmatpush.msra.mxu0 0.0
  %169 = vmatpush.msra.mxu0 0.0
  %170 = vmatpush.msra.mxu0 0.0
  %171 = vmatpush.msra.mxu0 0.0
  %172 = vmatpush.msra.mxu0 0.0
  %173 = vmatpush.msra.mxu0 0.0
  %174 = vmatpush.msra.mxu0 0.0
  %175 = vmatpush.msra.mxu0 0.0
  %176 = vmatpush.msra.mxu0 %v45
  %177 = vmatpush.msra.mxu0 %v44
  %178 = vmatpush.msra.mxu0 %v43
  %179 = vmatpush.msra.mxu0 %v42
  %180 = vmatmul.f32.gmra.mxu0 %v162
  %v181 = vpop.f32.mrf.mxu0
  %v182 = vadd.f32 %v96, %v181
  %183 = vdwg.mxu0
  %v184 = vtanh.pop %v182
  %v185 = vmul.f32 %v184, %v28
  %v186 = vadd.f32 %v185, %v29
  %v187 = vmul.f32 %v186, %v152
  %189 = vrot.lane.b32.xlu0 %v186, 64
  %v190 = vpop.permute.xlu0 %189
  %v192 = vmul.f32 %v186, %v190
  %194 = vrot.lane.b32.xlu0 %v192, 32
  %v195 = vpop.permute.xlu0 %194
  %v197 = vadd.f32 %v187, %v195
  %v198 = vtanh.pop %v197
  %200 = vrot.lane.b32.xlu0 %v198, 64
  %v201 = vpop.permute.xlu0 %200
  %v203 = vmul.f32 %v186, %v201
  %205 = vrot.lane.b32.xlu0 %v203, 32
  %v206 = vpop.permute.xlu0 %205
  %v207 = vsel %vm50, %v206, 0
  %209 = vmatpush.msra.mxu0 0.0
  %210 = vmatpush.msra.mxu0 0.0
  %211 = vmatpush.msra.mxu0 0.0
  %212 = vmatpush.msra.mxu0 0.0
  %213 = vmatpush.msra.mxu0 0.0
  %214 = vmatpush.msra.mxu0 0.0
  %215 = vmatpush.msra.mxu0 0.0
  %216 = vmatpush.msra.mxu0 0.0
  %217 = vmatpush.msra.mxu0 0.0
  %218 = vmatpush.msra.mxu0 0.0
  %219 = vmatpush.msra.mxu0 0.0
  %220 = vmatpush.msra.mxu0 0.0
  %221 = vmatpush.msra.mxu0 %v45
  %222 = vmatpush.msra.mxu0 %v44
  %223 = vmatpush.msra.mxu0 %v43
  %224 = vmatpush.msra.mxu0 %v42
  %225 = vmatmul.f32.gmra.mxu0 %v207
  %v226 = vpop.f32.mrf.mxu0
  %v227 = vadd.f32 %v99, %v226
  %228 = vdwg.mxu0
  %v229 = vtanh.pop %v227
  %v230 = vmul.f32 %v229, %v28
  %v231 = vadd.f32 %v230, %v29
  %v232 = vmul.f32 %v231, %v197
  %234 = vrot.lane.b32.xlu0 %v231, 64
  %v235 = vpop.permute.xlu0 %234
  %v237 = vmul.f32 %v231, %v235
  %239 = vrot.lane.b32.xlu0 %v237, 32
  %v240 = vpop.permute.xlu0 %239
  %v242 = vadd.f32 %v232, %v240
  %v243 = vtanh.pop %v242
  %245 = vrot.lane.b32.xlu0 %v243, 64
  %v246 = vpop.permute.xlu0 %245
  %v248 = vmul.f32 %v231, %v246
  %250 = vrot.lane.b32.xlu0 %v248, 32
  %v251 = vpop.permute.xlu0 %250
  %v252 = vsel %vm50, %v251, 0
  %254 = vmatpush.msra.mxu0 0.0
  %255 = vmatpush.msra.mxu0 0.0
  %256 = vmatpush.msra.mxu0 0.0
  %257 = vmatpush.msra.mxu0 0.0
  %258 = vmatpush.msra.mxu0 0.0
  %259 = vmatpush.msra.mxu0 0.0
  %260 = vmatpush.msra.mxu0 0.0
  %261 = vmatpush.msra.mxu0 0.0
  %262 = vmatpush.msra.mxu0 0.0
  %263 = vmatpush.msra.mxu0 0.0
  %264 = vmatpush.msra.mxu0 0.0
  %265 = vmatpush.msra.mxu0 0.0
  %266 = vmatpush.msra.mxu0 %v45
  %267 = vmatpush.msra.mxu0 %v44
  %268 = vmatpush.msra.mxu0 %v43
  %269 = vmatpush.msra.mxu0 %v42
  %270 = vmatmul.f32.gmra.mxu0 %v252
  %v271 = vpop.f32.mrf.mxu0
  %v272 = vadd.f32 %v102, %v271
  %273 = vdwg.mxu0
  %v274 = vtanh.pop %v272
  %v275 = vmul.f32 %v274, %v28
  %v276 = vadd.f32 %v275, %v29
  %v277 = vmul.f32 %v276, %v242
  %279 = vrot.lane.b32.xlu0 %v276, 64
  %v280 = vpop.permute.xlu0 %279
  %v282 = vmul.f32 %v276, %v280
  %284 = vrot.lane.b32.xlu0 %v282, 32
  %v285 = vpop.permute.xlu0 %284
  %v287 = vadd.f32 %v277, %v285
  %v288 = vtanh.pop %v287
  %290 = vrot.lane.b32.xlu0 %v288, 64
  %v291 = vpop.permute.xlu0 %290
  %v293 = vmul.f32 %v276, %v291
  %295 = vrot.lane.b32.xlu0 %v293, 32
  %v296 = vpop.permute.xlu0 %295
  %v297 = vsel %vm50, %v296, 0
  %299 = vmatpush.msra.mxu0 0.0
  %300 = vmatpush.msra.mxu0 0.0
  %301 = vmatpush.msra.mxu0 0.0
  %302 = vmatpush.msra.mxu0 0.0
  %303 = vmatpush.msra.mxu0 0.0
  %304 = vmatpush.msra.mxu0 0.0
  %305 = vmatpush.msra.mxu0 0.0
  %306 = vmatpush.msra.mxu0 0.0
  %307 = vmatpush.msra.mxu0 0.0
  %308 = vmatpush.msra.mxu0 0.0
  %309 = vmatpush.msra.mxu0 0.0
  %310 = vmatpush.msra.mxu0 0.0
  %311 = vmatpush.msra.mxu0 %v45
  %312 = vmatpush.msra.mxu0 %v44
  %313 = vmatpush.msra.mxu0 %v43
  %314 = vmatpush.msra.mxu0 %v42
  %315 = vmatmul.f32.gmra.mxu0 %v297
  %v316 = vpop.f32.mrf.mxu0
  %v317 = vadd.f32 %v105, %v316
  %318 = vdwg.mxu0
  %v319 = vtanh.pop %v317
  %v320 = vmul.f32 %v319, %v28
  %v321 = vadd.f32 %v320, %v29
  %v322 = vmul.f32 %v321, %v287
  %324 = vrot.lane.b32.xlu0 %v321, 64
  %v325 = vpop.permute.xlu0 %324
  %v327 = vmul.f32 %v321, %v325
  %329 = vrot.lane.b32.xlu0 %v327, 32
  %v330 = vpop.permute.xlu0 %329
  %v332 = vadd.f32 %v322, %v330
  %v333 = vtanh.pop %v332
  %335 = vrot.lane.b32.xlu0 %v333, 64
  %v336 = vpop.permute.xlu0 %335
  %v338 = vmul.f32 %v321, %v336
  %340 = vrot.lane.b32.xlu0 %v338, 32
  %v341 = vpop.permute.xlu0 %340
  %v342 = vsel %vm50, %v341, 0
  %344 = vmatpush.msra.mxu0 0.0
  %345 = vmatpush.msra.mxu0 0.0
  %346 = vmatpush.msra.mxu0 0.0
  %347 = vmatpush.msra.mxu0 0.0
  %348 = vmatpush.msra.mxu0 0.0
  %349 = vmatpush.msra.mxu0 0.0
  %350 = vmatpush.msra.mxu0 0.0
  %351 = vmatpush.msra.mxu0 0.0
  %352 = vmatpush.msra.mxu0 0.0
  %353 = vmatpush.msra.mxu0 0.0
  %354 = vmatpush.msra.mxu0 0.0
  %355 = vmatpush.msra.mxu0 0.0
  %356 = vmatpush.msra.mxu0 %v45
  %357 = vmatpush.msra.mxu0 %v44
  %358 = vmatpush.msra.mxu0 %v43
  %359 = vmatpush.msra.mxu0 %v42
  %360 = vmatmul.f32.gmra.mxu0 %v342
  %v361 = vpop.f32.mrf.mxu0
  %v362 = vadd.f32 %v108, %v361
  %363 = vdwg.mxu0
  %v364 = vtanh.pop %v362
  %v365 = vmul.f32 %v364, %v28
  %v366 = vadd.f32 %v365, %v29
  %v367 = vmul.f32 %v366, %v332
  %369 = vrot.lane.b32.xlu0 %v366, 64
  %v370 = vpop.permute.xlu0 %369
  %v372 = vmul.f32 %v366, %v370
  %374 = vrot.lane.b32.xlu0 %v372, 32
  %v375 = vpop.permute.xlu0 %374
  %v377 = vadd.f32 %v367, %v375
  %v378 = vtanh.pop %v377
  %380 = vrot.lane.b32.xlu0 %v378, 64
  %v381 = vpop.permute.xlu0 %380
  %v383 = vmul.f32 %v366, %v381
  %385 = vrot.lane.b32.xlu0 %v383, 32
  %v386 = vpop.permute.xlu0 %385
  %v387 = vsel %vm50, %v386, 0
  %389 = vmatpush.msra.mxu0 0.0
  %390 = vmatpush.msra.mxu0 0.0
  %391 = vmatpush.msra.mxu0 0.0
  %392 = vmatpush.msra.mxu0 0.0
  %393 = vmatpush.msra.mxu0 0.0
  %394 = vmatpush.msra.mxu0 0.0
  %395 = vmatpush.msra.mxu0 0.0
  %396 = vmatpush.msra.mxu0 0.0
  %397 = vmatpush.msra.mxu0 0.0
  %398 = vmatpush.msra.mxu0 0.0
  %399 = vmatpush.msra.mxu0 0.0
  %400 = vmatpush.msra.mxu0 0.0
  %401 = vmatpush.msra.mxu0 %v45
  %402 = vmatpush.msra.mxu0 %v44
  %403 = vmatpush.msra.mxu0 %v43
  %404 = vmatpush.msra.mxu0 %v42
  %405 = vmatmul.f32.gmra.mxu0 %v387
  %v406 = vpop.f32.mrf.mxu0
  %v407 = vadd.f32 %v111, %v406
  %408 = vdwg.mxu0
  %v409 = vtanh.pop %v407
  %v410 = vmul.f32 %v409, %v28
  %v411 = vadd.f32 %v410, %v29
  %v412 = vmul.f32 %v411, %v377
  %414 = vrot.lane.b32.xlu0 %v411, 64
  %v415 = vpop.permute.xlu0 %414
  %v417 = vmul.f32 %v411, %v415
  %419 = vrot.lane.b32.xlu0 %v417, 32
  %v420 = vpop.permute.xlu0 %419
  %v422 = vadd.f32 %v412, %v420
  %v423 = vtanh.pop %v422
  %425 = vrot.lane.b32.xlu0 %v423, 64
  %v426 = vpop.permute.xlu0 %425
  %v428 = vmul.f32 %v411, %v426
  %430 = vrot.lane.b32.xlu0 %v428, 32
  %v431 = vpop.permute.xlu0 %430
  %v432 = vsel %vm50, %v431, 0
  %434 = vmatpush.msra.mxu0 0.0
  %435 = vmatpush.msra.mxu0 0.0
  %436 = vmatpush.msra.mxu0 0.0
  %437 = vmatpush.msra.mxu0 0.0
  %438 = vmatpush.msra.mxu0 0.0
  %439 = vmatpush.msra.mxu0 0.0
  %440 = vmatpush.msra.mxu0 0.0
  %441 = vmatpush.msra.mxu0 0.0
  %442 = vmatpush.msra.mxu0 0.0
  %443 = vmatpush.msra.mxu0 0.0
  %444 = vmatpush.msra.mxu0 0.0
  %445 = vmatpush.msra.mxu0 0.0
  %446 = vmatpush.msra.mxu0 %v45
  %447 = vmatpush.msra.mxu0 %v44
  %448 = vmatpush.msra.mxu0 %v43
  %449 = vmatpush.msra.mxu0 %v42
  %450 = vmatmul.f32.gmra.mxu0 %v432
  %v451 = vpop.f32.mrf.mxu0
  %v452 = vadd.f32 %v114, %v451
  %453 = vdwg.mxu0
  %v454 = vtanh.pop %v452
  %v455 = vmul.f32 %v454, %v28
  %v456 = vadd.f32 %v455, %v29
  %v457 = vmul.f32 %v456, %v422
  %459 = vrot.lane.b32.xlu0 %v456, 64
  %v460 = vpop.permute.xlu0 %459
  %v462 = vmul.f32 %v456, %v460
  %464 = vrot.lane.b32.xlu0 %v462, 32
  %v465 = vpop.permute.xlu0 %464
  %v467 = vadd.f32 %v457, %v465
  %v468 = vtanh.pop %v467
  %470 = vrot.lane.b32.xlu0 %v468, 64
  %v471 = vpop.permute.xlu0 %470
  %v473 = vmul.f32 %v456, %v471
  %s474 = scalar_lea.vmem %s1, 32
  %v475 = vld [vmem:[%s474] sm:$0xff]
  %v476 = vld [vmem:[%s474 + $0x8] sm:$0xff]
  %v477 = vld [vmem:[%s474 + $0x10] sm:$0xff]
  %v478 = vld [vmem:[%s474 + $0x18] sm:$0xff]
  %s479 = scalar_lea.vmem %s2, 32
  %v480 = vld [vmem:[%s479] sm:$0xff]
  %v481 = vld [vmem:[%s479 + $0x8] sm:$0xff]
  %v482 = vld [vmem:[%s479 + $0x10] sm:$0xff]
  %v483 = vld [vmem:[%s479 + $0x18] sm:$0xff]
  %s484 = scalar_lea.vmem %s3, 1
  %v485 = vld [vmem:[%s484] sm:$0x1]
  %v487 = vperm.slane %v485, 0
  %490 = vrot.lane.b32.xlu0 %v473, 32
  %v491 = vpop.permute.xlu0 %490
  %v492 = vsel %vm50, %v491, 0
  %494 = vmatpush.msra.mxu0 0.0
  %495 = vmatpush.msra.mxu0 0.0
  %496 = vmatpush.msra.mxu0 0.0
  %497 = vmatpush.msra.mxu0 0.0
  %498 = vmatpush.msra.mxu0 0.0
  %499 = vmatpush.msra.mxu0 0.0
  %500 = vmatpush.msra.mxu0 0.0
  %501 = vmatpush.msra.mxu0 0.0
  %502 = vmatpush.msra.mxu0 0.0
  %503 = vmatpush.msra.mxu0 0.0
  %504 = vmatpush.msra.mxu0 0.0
  %505 = vmatpush.msra.mxu0 0.0
  %506 = vmatpush.msra.mxu0 %v478
  %507 = vmatpush.msra.mxu0 %v477
  %508 = vmatpush.msra.mxu0 %v476
  %509 = vmatpush.msra.mxu0 %v475
  %510 = vmatmul.f32.gmra.mxu0 %v162
  %v511 = vpop.f32.mrf.mxu0
  %v512 = vadd.f32 %v487, %v511
  %513 = vmatmul.f32.gmra.mxu0 %v207
  %v514 = vpop.f32.mrf.mxu0
  %v515 = vadd.f32 %v487, %v514
  %516 = vmatmul.f32.gmra.mxu0 %v252
  %v517 = vpop.f32.mrf.mxu0
  %v518 = vadd.f32 %v487, %v517
  %519 = vmatmul.f32.gmra.mxu0 %v297
  %v520 = vpop.f32.mrf.mxu0
  %v521 = vadd.f32 %v487, %v520
  %522 = vmatmul.f32.gmra.mxu0 %v342
  %v523 = vpop.f32.mrf.mxu0
  %v524 = vadd.f32 %v487, %v523
  %525 = vmatmul.f32.gmra.mxu0 %v387
  %v526 = vpop.f32.mrf.mxu0
  %v527 = vadd.f32 %v487, %v526
  %528 = vmatmul.f32.gmra.mxu0 %v432
  %v529 = vpop.f32.mrf.mxu0
  %v530 = vadd.f32 %v487, %v529
  %531 = vmatmul.f32.gmra.mxu0 %v492
  %v532 = vpop.f32.mrf.mxu0
  %v533 = vadd.f32 %v487, %v532
  %534 = vdwg.mxu0
  %535 = vmatpush.msra.mxu0 0.0
  %536 = vmatpush.msra.mxu0 0.0
  %537 = vmatpush.msra.mxu0 0.0
  %538 = vmatpush.msra.mxu0 0.0
  %539 = vmatpush.msra.mxu0 0.0
  %540 = vmatpush.msra.mxu0 0.0
  %541 = vmatpush.msra.mxu0 0.0
  %542 = vmatpush.msra.mxu0 0.0
  %543 = vmatpush.msra.mxu0 0.0
  %544 = vmatpush.msra.mxu0 0.0
  %545 = vmatpush.msra.mxu0 0.0
  %546 = vmatpush.msra.mxu0 0.0
  %547 = vmatpush.msra.mxu0 %v483
  %548 = vmatpush.msra.mxu0 %v482
  %549 = vmatpush.msra.mxu0 %v481
  %550 = vmatpush.msra.mxu0 %v480
  %551 = vmatmul.f32.gmra.mxu0 %v117
  %v552 = vpop.f32.mrf.mxu0
  %v553 = vadd.f32 %v512, %v552
  %554 = vdwg.mxu0
  %v555 = vtanh.pop %v553
  %v556 = vmul.f32 %v555, %v28
  %v557 = vadd.f32 %v556, %v29
  %v558 = vmul.f32 %v557, 0.0
  %560 = vrot.lane.b32.xlu0 %v557, 64
  %v561 = vpop.permute.xlu0 %560
  %v563 = vmul.f32 %v557, %v561
  %565 = vrot.lane.b32.xlu0 %v563, 32
  %v566 = vpop.permute.xlu0 %565
  %v568 = vadd.f32 %v558, %v566
  %v569 = vtanh.pop %v568
  %571 = vrot.lane.b32.xlu0 %v569, 64
  %v572 = vpop.permute.xlu0 %571
  %v574 = vmul.f32 %v557, %v572
  %576 = vrot.lane.b32.xlu0 %v574, 32
  %v577 = vpop.permute.xlu0 %576
  %v578 = vsel %vm50, %v577, 0
  %580 = vmatpush.msra.mxu0 0.0
  %581 = vmatpush.msra.mxu0 0.0
  %582 = vmatpush.msra.mxu0 0.0
  %583 = vmatpush.msra.mxu0 0.0
  %584 = vmatpush.msra.mxu0 0.0
  %585 = vmatpush.msra.mxu0 0.0
  %586 = vmatpush.msra.mxu0 0.0
  %587 = vmatpush.msra.mxu0 0.0
  %588 = vmatpush.msra.mxu0 0.0
  %589 = vmatpush.msra.mxu0 0.0
  %590 = vmatpush.msra.mxu0 0.0
  %591 = vmatpush.msra.mxu0 0.0
  %592 = vmatpush.msra.mxu0 %v483
  %593 = vmatpush.msra.mxu0 %v482
  %594 = vmatpush.msra.mxu0 %v481
  %595 = vmatpush.msra.mxu0 %v480
  %596 = vmatmul.f32.gmra.mxu0 %v578
  %v597 = vpop.f32.mrf.mxu0
  %v598 = vadd.f32 %v515, %v597
  %599 = vdwg.mxu0
  %v600 = vtanh.pop %v598
  %v601 = vmul.f32 %v600, %v28
  %v602 = vadd.f32 %v601, %v29
  %v603 = vmul.f32 %v602, %v568
  %605 = vrot.lane.b32.xlu0 %v602, 64
  %v606 = vpop.permute.xlu0 %605
  %v608 = vmul.f32 %v602, %v606
  %610 = vrot.lane.b32.xlu0 %v608, 32
  %v611 = vpop.permute.xlu0 %610
  %v613 = vadd.f32 %v603, %v611
  %v614 = vtanh.pop %v613
  %616 = vrot.lane.b32.xlu0 %v614, 64
  %v617 = vpop.permute.xlu0 %616
  %v619 = vmul.f32 %v602, %v617
  %621 = vrot.lane.b32.xlu0 %v619, 32
  %v622 = vpop.permute.xlu0 %621
  %v623 = vsel %vm50, %v622, 0
  %625 = vmatpush.msra.mxu0 0.0
  %626 = vmatpush.msra.mxu0 0.0
  %627 = vmatpush.msra.mxu0 0.0
  %628 = vmatpush.msra.mxu0 0.0
  %629 = vmatpush.msra.mxu0 0.0
  %630 = vmatpush.msra.mxu0 0.0
  %631 = vmatpush.msra.mxu0 0.0
  %632 = vmatpush.msra.mxu0 0.0
  %633 = vmatpush.msra.mxu0 0.0
  %634 = vmatpush.msra.mxu0 0.0
  %635 = vmatpush.msra.mxu0 0.0
  %636 = vmatpush.msra.mxu0 0.0
  %637 = vmatpush.msra.mxu0 %v483
  %638 = vmatpush.msra.mxu0 %v482
  %639 = vmatpush.msra.mxu0 %v481
  %640 = vmatpush.msra.mxu0 %v480
  %641 = vmatmul.f32.gmra.mxu0 %v623
  %v642 = vpop.f32.mrf.mxu0
  %v643 = vadd.f32 %v518, %v642
  %644 = vdwg.mxu0
  %v645 = vtanh.pop %v643
  %v646 = vmul.f32 %v645, %v28
  %v647 = vadd.f32 %v646, %v29
  %v648 = vmul.f32 %v647, %v613
  %650 = vrot.lane.b32.xlu0 %v647, 64
  %v651 = vpop.permute.xlu0 %650
  %v653 = vmul.f32 %v647, %v651
  %655 = vrot.lane.b32.xlu0 %v653, 32
  %v656 = vpop.permute.xlu0 %655
  %v658 = vadd.f32 %v648, %v656
  %v659 = vtanh.pop %v658
  %661 = vrot.lane.b32.xlu0 %v659, 64
  %v662 = vpop.permute.xlu0 %661
  %v664 = vmul.f32 %v647, %v662
  %666 = vrot.lane.b32.xlu0 %v664, 32
  %v667 = vpop.permute.xlu0 %666
  %v668 = vsel %vm50, %v667, 0
  %670 = vmatpush.msra.mxu0 0.0
  %671 = vmatpush.msra.mxu0 0.0
  %672 = vmatpush.msra.mxu0 0.0
  %673 = vmatpush.msra.mxu0 0.0
  %674 = vmatpush.msra.mxu0 0.0
  %675 = vmatpush.msra.mxu0 0.0
  %676 = vmatpush.msra.mxu0 0.0
  %677 = vmatpush.msra.mxu0 0.0
  %678 = vmatpush.msra.mxu0 0.0
  %679 = vmatpush.msra.mxu0 0.0
  %680 = vmatpush.msra.mxu0 0.0
  %681 = vmatpush.msra.mxu0 0.0
  %682 = vmatpush.msra.mxu0 %v483
  %683 = vmatpush.msra.mxu0 %v482
  %684 = vmatpush.msra.mxu0 %v481
  %685 = vmatpush.msra.mxu0 %v480
  %686 = vmatmul.f32.gmra.mxu0 %v668
  %v687 = vpop.f32.mrf.mxu0
  %v688 = vadd.f32 %v521, %v687
  %689 = vdwg.mxu0
  %v690 = vtanh.pop %v688
  %v691 = vmul.f32 %v690, %v28
  %v692 = vadd.f32 %v691, %v29
  %v693 = vmul.f32 %v692, %v658
  %695 = vrot.lane.b32.xlu0 %v692, 64
  %v696 = vpop.permute.xlu0 %695
  %v698 = vmul.f32 %v692, %v696
  %700 = vrot.lane.b32.xlu0 %v698, 32
  %v701 = vpop.permute.xlu0 %700
  %v703 = vadd.f32 %v693, %v701
  %v704 = vtanh.pop %v703
  %706 = vrot.lane.b32.xlu0 %v704, 64
  %v707 = vpop.permute.xlu0 %706
  %v709 = vmul.f32 %v692, %v707
  %711 = vrot.lane.b32.xlu0 %v709, 32
  %v712 = vpop.permute.xlu0 %711
  %v713 = vsel %vm50, %v712, 0
  %715 = vmatpush.msra.mxu0 0.0
  %716 = vmatpush.msra.mxu0 0.0
  %717 = vmatpush.msra.mxu0 0.0
  %718 = vmatpush.msra.mxu0 0.0
  %719 = vmatpush.msra.mxu0 0.0
  %720 = vmatpush.msra.mxu0 0.0
  %721 = vmatpush.msra.mxu0 0.0
  %722 = vmatpush.msra.mxu0 0.0
  %723 = vmatpush.msra.mxu0 0.0
  %724 = vmatpush.msra.mxu0 0.0
  %725 = vmatpush.msra.mxu0 0.0
  %726 = vmatpush.msra.mxu0 0.0
  %727 = vmatpush.msra.mxu0 %v483
  %728 = vmatpush.msra.mxu0 %v482
  %729 = vmatpush.msra.mxu0 %v481
  %730 = vmatpush.msra.mxu0 %v480
  %731 = vmatmul.f32.gmra.mxu0 %v713
  %v732 = vpop.f32.mrf.mxu0
  %v733 = vadd.f32 %v524, %v732
  %734 = vdwg.mxu0
  %v735 = vtanh.pop %v733
  %v736 = vmul.f32 %v735, %v28
  %v737 = vadd.f32 %v736, %v29
  %v738 = vmul.f32 %v737, %v703
  %740 = vrot.lane.b32.xlu0 %v737, 64
  %v741 = vpop.permute.xlu0 %740
  %v743 = vmul.f32 %v737, %v741
  %745 = vrot.lane.b32.xlu0 %v743, 32
  %v746 = vpop.permute.xlu0 %745
  %v748 = vadd.f32 %v738, %v746
  %v749 = vtanh.pop %v748
  %751 = vrot.lane.b32.xlu0 %v749, 64
  %v752 = vpop.permute.xlu0 %751
  %v754 = vmul.f32 %v737, %v752
  %756 = vrot.lane.b32.xlu0 %v754, 32
  %v757 = vpop.permute.xlu0 %756
  %v758 = vsel %vm50, %v757, 0
  %760 = vmatpush.msra.mxu0 0.0
  %761 = vmatpush.msra.mxu0 0.0
  %762 = vmatpush.msra.mxu0 0.0
  %763 = vmatpush.msra.mxu0 0.0
  %764 = vmatpush.msra.mxu0 0.0
  %765 = vmatpush.msra.mxu0 0.0
  %766 = vmatpush.msra.mxu0 0.0
  %767 = vmatpush.msra.mxu0 0.0
  %768 = vmatpush.msra.mxu0 0.0
  %769 = vmatpush.msra.mxu0 0.0
  %770 = vmatpush.msra.mxu0 0.0
  %771 = vmatpush.msra.mxu0 0.0
  %772 = vmatpush.msra.mxu0 %v483
  %773 = vmatpush.msra.mxu0 %v482
  %774 = vmatpush.msra.mxu0 %v481
  %775 = vmatpush.msra.mxu0 %v480
  %776 = vmatmul.f32.gmra.mxu0 %v758
  %v777 = vpop.f32.mrf.mxu0
  %v778 = vadd.f32 %v527, %v777
  %779 = vdwg.mxu0
  %v780 = vtanh.pop %v778
  %v781 = vmul.f32 %v780, %v28
  %v782 = vadd.f32 %v781, %v29
  %v783 = vmul.f32 %v782, %v748
  %785 = vrot.lane.b32.xlu0 %v782, 64
  %v786 = vpop.permute.xlu0 %785
  %v788 = vmul.f32 %v782, %v786
  %790 = vrot.lane.b32.xlu0 %v788, 32
  %v791 = vpop.permute.xlu0 %790
  %v793 = vadd.f32 %v783, %v791
  %v794 = vtanh.pop %v793
  %796 = vrot.lane.b32.xlu0 %v794, 64
  %v797 = vpop.permute.xlu0 %796
  %v799 = vmul.f32 %v782, %v797
  %801 = vrot.lane.b32.xlu0 %v799, 32
  %v802 = vpop.permute.xlu0 %801
  %v803 = vsel %vm50, %v802, 0
  %805 = vmatpush.msra.mxu0 0.0
  %806 = vmatpush.msra.mxu0 0.0
  %807 = vmatpush.msra.mxu0 0.0
  %808 = vmatpush.msra.mxu0 0.0
  %809 = vmatpush.msra.mxu0 0.0
  %810 = vmatpush.msra.mxu0 0.0
  %811 = vmatpush.msra.mxu0 0.0
  %812 = vmatpush.msra.mxu0 0.0
  %813 = vmatpush.msra.mxu0 0.0
  %814 = vmatpush.msra.mxu0 0.0
  %815 = vmatpush.msra.mxu0 0.0
  %816 = vmatpush.msra.mxu0 0.0
  %817 = vmatpush.msra.mxu0 %v483
  %818 = vmatpush.msra.mxu0 %v482
  %819 = vmatpush.msra.mxu0 %v481
  %820 = vmatpush.msra.mxu0 %v480
  %821 = vmatmul.f32.gmra.mxu0 %v803
  %v822 = vpop.f32.mrf.mxu0
  %v823 = vadd.f32 %v530, %v822
  %824 = vdwg.mxu0
  %v825 = vtanh.pop %v823
  %v826 = vmul.f32 %v825, %v28
  %v827 = vadd.f32 %v826, %v29
  %v828 = vmul.f32 %v827, %v793
  %830 = vrot.lane.b32.xlu0 %v827, 64
  %v831 = vpop.permute.xlu0 %830
  %v833 = vmul.f32 %v827, %v831
  %835 = vrot.lane.b32.xlu0 %v833, 32
  %v836 = vpop.permute.xlu0 %835
  %v838 = vadd.f32 %v828, %v836
  %v839 = vtanh.pop %v838
  %841 = vrot.lane.b32.xlu0 %v839, 64
  %v842 = vpop.permute.xlu0 %841
  %v844 = vmul.f32 %v827, %v842
  %846 = vrot.lane.b32.xlu0 %v844, 32
  %v847 = vpop.permute.xlu0 %846
  %v848 = vsel %vm50, %v847, 0
  %850 = vmatpush.msra.mxu0 0.0
  %851 = vmatpush.msra.mxu0 0.0
  %852 = vmatpush.msra.mxu0 0.0
  %853 = vmatpush.msra.mxu0 0.0
  %854 = vmatpush.msra.mxu0 0.0
  %855 = vmatpush.msra.mxu0 0.0
  %856 = vmatpush.msra.mxu0 0.0
  %857 = vmatpush.msra.mxu0 0.0
  %858 = vmatpush.msra.mxu0 0.0
  %859 = vmatpush.msra.mxu0 0.0
  %860 = vmatpush.msra.mxu0 0.0
  %861 = vmatpush.msra.mxu0 0.0
  %862 = vmatpush.msra.mxu0 %v483
  %863 = vmatpush.msra.mxu0 %v482
  %864 = vmatpush.msra.mxu0 %v481
  %865 = vmatpush.msra.mxu0 %v480
  %866 = vmatmul.f32.gmra.mxu0 %v848
  %v867 = vpop.f32.mrf.mxu0
  %v868 = vadd.f32 %v533, %v867
  %869 = vdwg.mxu0
  %v870 = vtanh.pop %v868
  %v871 = vmul.f32 %v870, %v28
  %v872 = vadd.f32 %v871, %v29
  %v873 = vmul.f32 %v872, %v838
  %875 = vrot.lane.b32.xlu0 %v872, 64
  %v876 = vpop.permute.xlu0 %875
  %v878 = vmul.f32 %v872, %v876
  %880 = vrot.lane.b32.xlu0 %v878, 32
  %v881 = vpop.permute.xlu0 %880
  %v883 = vadd.f32 %v873, %v881
  %v884 = vtanh.pop %v883
  %886 = vrot.lane.b32.xlu0 %v884, 64
  %v887 = vpop.permute.xlu0 %886
  %v889 = vmul.f32 %v872, %v887
  %s890 = scalar_lea.vmem %s1, 64
  %v891 = vld [vmem:[%s890] sm:$0xff]
  %v892 = vld [vmem:[%s890 + $0x8] sm:$0xff]
  %v893 = vld [vmem:[%s890 + $0x10] sm:$0xff]
  %v894 = vld [vmem:[%s890 + $0x18] sm:$0xff]
  %s895 = scalar_lea.vmem %s2, 64
  %v896 = vld [vmem:[%s895] sm:$0xff]
  %v897 = vld [vmem:[%s895 + $0x8] sm:$0xff]
  %v898 = vld [vmem:[%s895 + $0x10] sm:$0xff]
  %v899 = vld [vmem:[%s895 + $0x18] sm:$0xff]
  %s900 = scalar_lea.vmem %s3, 2
  %v901 = vld [vmem:[%s900] sm:$0x1]
  %v903 = vperm.slane %v901, 0
  %906 = vrot.lane.b32.xlu0 %v889, 32
  %v907 = vpop.permute.xlu0 %906
  %v908 = vsel %vm50, %v907, 0
  %910 = vmatpush.msra.mxu0 0.0
  %911 = vmatpush.msra.mxu0 0.0
  %912 = vmatpush.msra.mxu0 0.0
  %913 = vmatpush.msra.mxu0 0.0
  %914 = vmatpush.msra.mxu0 0.0
  %915 = vmatpush.msra.mxu0 0.0
  %916 = vmatpush.msra.mxu0 0.0
  %917 = vmatpush.msra.mxu0 0.0
  %918 = vmatpush.msra.mxu0 0.0
  %919 = vmatpush.msra.mxu0 0.0
  %920 = vmatpush.msra.mxu0 0.0
  %921 = vmatpush.msra.mxu0 0.0
  %922 = vmatpush.msra.mxu0 %v894
  %923 = vmatpush.msra.mxu0 %v893
  %924 = vmatpush.msra.mxu0 %v892
  %925 = vmatpush.msra.mxu0 %v891
  %926 = vmatmul.f32.gmra.mxu0 %v578
  %v927 = vpop.f32.mrf.mxu0
  %v928 = vadd.f32 %v903, %v927
  %929 = vmatmul.f32.gmra.mxu0 %v623
  %v930 = vpop.f32.mrf.mxu0
  %v931 = vadd.f32 %v903, %v930
  %932 = vmatmul.f32.gmra.mxu0 %v668
  %v933 = vpop.f32.mrf.mxu0
  %v934 = vadd.f32 %v903, %v933
  %935 = vmatmul.f32.gmra.mxu0 %v713
  %v936 = vpop.f32.mrf.mxu0
  %v937 = vadd.f32 %v903, %v936
  %938 = vmatmul.f32.gmra.mxu0 %v758
  %v939 = vpop.f32.mrf.mxu0
  %v940 = vadd.f32 %v903, %v939
  %941 = vmatmul.f32.gmra.mxu0 %v803
  %v942 = vpop.f32.mrf.mxu0
  %v943 = vadd.f32 %v903, %v942
  %944 = vmatmul.f32.gmra.mxu0 %v848
  %v945 = vpop.f32.mrf.mxu0
  %v946 = vadd.f32 %v903, %v945
  %947 = vmatmul.f32.gmra.mxu0 %v908
  %v948 = vpop.f32.mrf.mxu0
  %v949 = vadd.f32 %v903, %v948
  %950 = vdwg.mxu0
  %951 = vmatpush.msra.mxu0 0.0
  %952 = vmatpush.msra.mxu0 0.0
  %953 = vmatpush.msra.mxu0 0.0
  %954 = vmatpush.msra.mxu0 0.0
  %955 = vmatpush.msra.mxu0 0.0
  %956 = vmatpush.msra.mxu0 0.0
  %957 = vmatpush.msra.mxu0 0.0
  %958 = vmatpush.msra.mxu0 0.0
  %959 = vmatpush.msra.mxu0 0.0
  %960 = vmatpush.msra.mxu0 0.0
  %961 = vmatpush.msra.mxu0 0.0
  %962 = vmatpush.msra.mxu0 0.0
  %963 = vmatpush.msra.mxu0 %v899
  %964 = vmatpush.msra.mxu0 %v898
  %965 = vmatpush.msra.mxu0 %v897
  %966 = vmatpush.msra.mxu0 %v896
  %967 = vmatmul.f32.gmra.mxu0 %v117
  %v968 = vpop.f32.mrf.mxu0
  %v969 = vadd.f32 %v928, %v968
  %970 = vdwg.mxu0
  %v971 = vtanh.pop %v969
  %v972 = vmul.f32 %v971, %v28
  %v973 = vadd.f32 %v972, %v29
  %v974 = vmul.f32 %v973, 0.0
  %976 = vrot.lane.b32.xlu0 %v973, 64
  %v977 = vpop.permute.xlu0 %976
  %v979 = vmul.f32 %v973, %v977
  %981 = vrot.lane.b32.xlu0 %v979, 32
  %v982 = vpop.permute.xlu0 %981
  %v984 = vadd.f32 %v974, %v982
  %v985 = vtanh.pop %v984
  %987 = vrot.lane.b32.xlu0 %v985, 64
  %v988 = vpop.permute.xlu0 %987
  %v990 = vmul.f32 %v973, %v988
  %992 = vrot.lane.b32.xlu0 %v990, 32
  %v993 = vpop.permute.xlu0 %992
  %v994 = vsel %vm50, %v993, 0
  %996 = vmatpush.msra.mxu0 0.0
  %997 = vmatpush.msra.mxu0 0.0
  %998 = vmatpush.msra.mxu0 0.0
  %999 = vmatpush.msra.mxu0 0.0
  %1000 = vmatpush.msra.mxu0 0.0
  %1001 = vmatpush.msra.mxu0 0.0
  %1002 = vmatpush.msra.mxu0 0.0
  %1003 = vmatpush.msra.mxu0 0.0
  %1004 = vmatpush.msra.mxu0 0.0
  %1005 = vmatpush.msra.mxu0 0.0
  %1006 = vmatpush.msra.mxu0 0.0
  %1007 = vmatpush.msra.mxu0 0.0
  %1008 = vmatpush.msra.mxu0 %v899
  %1009 = vmatpush.msra.mxu0 %v898
  %1010 = vmatpush.msra.mxu0 %v897
  %1011 = vmatpush.msra.mxu0 %v896
  %1012 = vmatmul.f32.gmra.mxu0 %v994
  %v1013 = vpop.f32.mrf.mxu0
  %v1014 = vadd.f32 %v931, %v1013
  %1015 = vdwg.mxu0
  %v1016 = vtanh.pop %v1014
  %v1017 = vmul.f32 %v1016, %v28
  %v1018 = vadd.f32 %v1017, %v29
  %v1019 = vmul.f32 %v1018, %v984
  %1021 = vrot.lane.b32.xlu0 %v1018, 64
  %v1022 = vpop.permute.xlu0 %1021
  %v1024 = vmul.f32 %v1018, %v1022
  %1026 = vrot.lane.b32.xlu0 %v1024, 32
  %v1027 = vpop.permute.xlu0 %1026
  %v1029 = vadd.f32 %v1019, %v1027
  %v1030 = vtanh.pop %v1029
  %1032 = vrot.lane.b32.xlu0 %v1030, 64
  %v1033 = vpop.permute.xlu0 %1032
  %v1035 = vmul.f32 %v1018, %v1033
  %1037 = vrot.lane.b32.xlu0 %v1035, 32
  %v1038 = vpop.permute.xlu0 %1037
  %v1039 = vsel %vm50, %v1038, 0
  %1041 = vmatpush.msra.mxu0 0.0
  %1042 = vmatpush.msra.mxu0 0.0
  %1043 = vmatpush.msra.mxu0 0.0
  %1044 = vmatpush.msra.mxu0 0.0
  %1045 = vmatpush.msra.mxu0 0.0
  %1046 = vmatpush.msra.mxu0 0.0
  %1047 = vmatpush.msra.mxu0 0.0
  %1048 = vmatpush.msra.mxu0 0.0
  %1049 = vmatpush.msra.mxu0 0.0
  %1050 = vmatpush.msra.mxu0 0.0
  %1051 = vmatpush.msra.mxu0 0.0
  %1052 = vmatpush.msra.mxu0 0.0
  %1053 = vmatpush.msra.mxu0 %v899
  %1054 = vmatpush.msra.mxu0 %v898
  %1055 = vmatpush.msra.mxu0 %v897
  %1056 = vmatpush.msra.mxu0 %v896
  %1057 = vmatmul.f32.gmra.mxu0 %v1039
  %v1058 = vpop.f32.mrf.mxu0
  %v1059 = vadd.f32 %v934, %v1058
  %1060 = vdwg.mxu0
  %v1061 = vtanh.pop %v1059
  %v1062 = vmul.f32 %v1061, %v28
  %v1063 = vadd.f32 %v1062, %v29
  %v1064 = vmul.f32 %v1063, %v1029
  %1066 = vrot.lane.b32.xlu0 %v1063, 64
  %v1067 = vpop.permute.xlu0 %1066
  %v1069 = vmul.f32 %v1063, %v1067
  %1071 = vrot.lane.b32.xlu0 %v1069, 32
  %v1072 = vpop.permute.xlu0 %1071
  %v1074 = vadd.f32 %v1064, %v1072
  %v1075 = vtanh.pop %v1074
  %1077 = vrot.lane.b32.xlu0 %v1075, 64
  %v1078 = vpop.permute.xlu0 %1077
  %v1080 = vmul.f32 %v1063, %v1078
  %1082 = vrot.lane.b32.xlu0 %v1080, 32
  %v1083 = vpop.permute.xlu0 %1082
  %v1084 = vsel %vm50, %v1083, 0
  %1086 = vmatpush.msra.mxu0 0.0
  %1087 = vmatpush.msra.mxu0 0.0
  %1088 = vmatpush.msra.mxu0 0.0
  %1089 = vmatpush.msra.mxu0 0.0
  %1090 = vmatpush.msra.mxu0 0.0
  %1091 = vmatpush.msra.mxu0 0.0
  %1092 = vmatpush.msra.mxu0 0.0
  %1093 = vmatpush.msra.mxu0 0.0
  %1094 = vmatpush.msra.mxu0 0.0
  %1095 = vmatpush.msra.mxu0 0.0
  %1096 = vmatpush.msra.mxu0 0.0
  %1097 = vmatpush.msra.mxu0 0.0
  %1098 = vmatpush.msra.mxu0 %v899
  %1099 = vmatpush.msra.mxu0 %v898
  %1100 = vmatpush.msra.mxu0 %v897
  %1101 = vmatpush.msra.mxu0 %v896
  %1102 = vmatmul.f32.gmra.mxu0 %v1084
  %v1103 = vpop.f32.mrf.mxu0
  %v1104 = vadd.f32 %v937, %v1103
  %1105 = vdwg.mxu0
  %v1106 = vtanh.pop %v1104
  %v1107 = vmul.f32 %v1106, %v28
  %v1108 = vadd.f32 %v1107, %v29
  %v1109 = vmul.f32 %v1108, %v1074
  %1111 = vrot.lane.b32.xlu0 %v1108, 64
  %v1112 = vpop.permute.xlu0 %1111
  %v1114 = vmul.f32 %v1108, %v1112
  %1116 = vrot.lane.b32.xlu0 %v1114, 32
  %v1117 = vpop.permute.xlu0 %1116
  %v1119 = vadd.f32 %v1109, %v1117
  %v1120 = vtanh.pop %v1119
  %1122 = vrot.lane.b32.xlu0 %v1120, 64
  %v1123 = vpop.permute.xlu0 %1122
  %v1125 = vmul.f32 %v1108, %v1123
  %1127 = vrot.lane.b32.xlu0 %v1125, 32
  %v1128 = vpop.permute.xlu0 %1127
  %v1129 = vsel %vm50, %v1128, 0
  %1131 = vmatpush.msra.mxu0 0.0
  %1132 = vmatpush.msra.mxu0 0.0
  %1133 = vmatpush.msra.mxu0 0.0
  %1134 = vmatpush.msra.mxu0 0.0
  %1135 = vmatpush.msra.mxu0 0.0
  %1136 = vmatpush.msra.mxu0 0.0
  %1137 = vmatpush.msra.mxu0 0.0
  %1138 = vmatpush.msra.mxu0 0.0
  %1139 = vmatpush.msra.mxu0 0.0
  %1140 = vmatpush.msra.mxu0 0.0
  %1141 = vmatpush.msra.mxu0 0.0
  %1142 = vmatpush.msra.mxu0 0.0
  %1143 = vmatpush.msra.mxu0 %v899
  %1144 = vmatpush.msra.mxu0 %v898
  %1145 = vmatpush.msra.mxu0 %v897
  %1146 = vmatpush.msra.mxu0 %v896
  %1147 = vmatmul.f32.gmra.mxu0 %v1129
  %v1148 = vpop.f32.mrf.mxu0
  %v1149 = vadd.f32 %v940, %v1148
  %1150 = vdwg.mxu0
  %v1151 = vtanh.pop %v1149
  %v1152 = vmul.f32 %v1151, %v28
  %v1153 = vadd.f32 %v1152, %v29
  %v1154 = vmul.f32 %v1153, %v1119
  %1156 = vrot.lane.b32.xlu0 %v1153, 64
  %v1157 = vpop.permute.xlu0 %1156
  %v1159 = vmul.f32 %v1153, %v1157
  %1161 = vrot.lane.b32.xlu0 %v1159, 32
  %v1162 = vpop.permute.xlu0 %1161
  %v1164 = vadd.f32 %v1154, %v1162
  %v1165 = vtanh.pop %v1164
  %1167 = vrot.lane.b32.xlu0 %v1165, 64
  %v1168 = vpop.permute.xlu0 %1167
  %v1170 = vmul.f32 %v1153, %v1168
  %1172 = vrot.lane.b32.xlu0 %v1170, 32
  %v1173 = vpop.permute.xlu0 %1172
  %v1174 = vsel %vm50, %v1173, 0
  %1176 = vmatpush.msra.mxu0 0.0
  %1177 = vmatpush.msra.mxu0 0.0
  %1178 = vmatpush.msra.mxu0 0.0
  %1179 = vmatpush.msra.mxu0 0.0
  %1180 = vmatpush.msra.mxu0 0.0
  %1181 = vmatpush.msra.mxu0 0.0
  %1182 = vmatpush.msra.mxu0 0.0
  %1183 = vmatpush.msra.mxu0 0.0
  %1184 = vmatpush.msra.mxu0 0.0
  %1185 = vmatpush.msra.mxu0 0.0
  %1186 = vmatpush.msra.mxu0 0.0
  %1187 = vmatpush.msra.mxu0 0.0
  %1188 = vmatpush.msra.mxu0 %v899
  %1189 = vmatpush.msra.mxu0 %v898
  %1190 = vmatpush.msra.mxu0 %v897
  %1191 = vmatpush.msra.mxu0 %v896
  %1192 = vmatmul.f32.gmra.mxu0 %v1174
  %v1193 = vpop.f32.mrf.mxu0
  %v1194 = vadd.f32 %v943, %v1193
  %1195 = vdwg.mxu0
  %v1196 = vtanh.pop %v1194
  %v1197 = vmul.f32 %v1196, %v28
  %v1198 = vadd.f32 %v1197, %v29
  %v1199 = vmul.f32 %v1198, %v1164
  %1201 = vrot.lane.b32.xlu0 %v1198, 64
  %v1202 = vpop.permute.xlu0 %1201
  %v1204 = vmul.f32 %v1198, %v1202
  %1206 = vrot.lane.b32.xlu0 %v1204, 32
  %v1207 = vpop.permute.xlu0 %1206
  %v1209 = vadd.f32 %v1199, %v1207
  %v1210 = vtanh.pop %v1209
  %1212 = vrot.lane.b32.xlu0 %v1210, 64
  %v1213 = vpop.permute.xlu0 %1212
  %v1215 = vmul.f32 %v1198, %v1213
  %1217 = vrot.lane.b32.xlu0 %v1215, 32
  %v1218 = vpop.permute.xlu0 %1217
  %v1219 = vsel %vm50, %v1218, 0
  %1221 = vmatpush.msra.mxu0 0.0
  %1222 = vmatpush.msra.mxu0 0.0
  %1223 = vmatpush.msra.mxu0 0.0
  %1224 = vmatpush.msra.mxu0 0.0
  %1225 = vmatpush.msra.mxu0 0.0
  %1226 = vmatpush.msra.mxu0 0.0
  %1227 = vmatpush.msra.mxu0 0.0
  %1228 = vmatpush.msra.mxu0 0.0
  %1229 = vmatpush.msra.mxu0 0.0
  %1230 = vmatpush.msra.mxu0 0.0
  %1231 = vmatpush.msra.mxu0 0.0
  %1232 = vmatpush.msra.mxu0 0.0
  %1233 = vmatpush.msra.mxu0 %v899
  %1234 = vmatpush.msra.mxu0 %v898
  %1235 = vmatpush.msra.mxu0 %v897
  %1236 = vmatpush.msra.mxu0 %v896
  %1237 = vmatmul.f32.gmra.mxu0 %v1219
  %v1238 = vpop.f32.mrf.mxu0
  %v1239 = vadd.f32 %v946, %v1238
  %1240 = vdwg.mxu0
  %v1241 = vtanh.pop %v1239
  %v1242 = vmul.f32 %v1241, %v28
  %v1243 = vadd.f32 %v1242, %v29
  %v1244 = vmul.f32 %v1243, %v1209
  %1246 = vrot.lane.b32.xlu0 %v1243, 64
  %v1247 = vpop.permute.xlu0 %1246
  %v1249 = vmul.f32 %v1243, %v1247
  %1251 = vrot.lane.b32.xlu0 %v1249, 32
  %v1252 = vpop.permute.xlu0 %1251
  %v1254 = vadd.f32 %v1244, %v1252
  %v1255 = vtanh.pop %v1254
  %1257 = vrot.lane.b32.xlu0 %v1255, 64
  %v1258 = vpop.permute.xlu0 %1257
  %v1260 = vmul.f32 %v1243, %v1258
  %1262 = vrot.lane.b32.xlu0 %v1260, 32
  %v1263 = vpop.permute.xlu0 %1262
  %v1264 = vsel %vm50, %v1263, 0
  %1266 = vmatpush.msra.mxu0 0.0
  %1267 = vmatpush.msra.mxu0 0.0
  %1268 = vmatpush.msra.mxu0 0.0
  %1269 = vmatpush.msra.mxu0 0.0
  %1270 = vmatpush.msra.mxu0 0.0
  %1271 = vmatpush.msra.mxu0 0.0
  %1272 = vmatpush.msra.mxu0 0.0
  %1273 = vmatpush.msra.mxu0 0.0
  %1274 = vmatpush.msra.mxu0 0.0
  %1275 = vmatpush.msra.mxu0 0.0
  %1276 = vmatpush.msra.mxu0 0.0
  %1277 = vmatpush.msra.mxu0 0.0
  %1278 = vmatpush.msra.mxu0 %v899
  %1279 = vmatpush.msra.mxu0 %v898
  %1280 = vmatpush.msra.mxu0 %v897
  %1281 = vmatpush.msra.mxu0 %v896
  %1282 = vmatmul.f32.gmra.mxu0 %v1264
  %v1283 = vpop.f32.mrf.mxu0
  %v1284 = vadd.f32 %v949, %v1283
  %1285 = vdwg.mxu0
  %v1286 = vtanh.pop %v1284
  %v1287 = vmul.f32 %v1286, %v28
  %v1288 = vadd.f32 %v1287, %v29
  %v1289 = vmul.f32 %v1288, %v1254
  %1291 = vrot.lane.b32.xlu0 %v1288, 64
  %v1292 = vpop.permute.xlu0 %1291
  %v1294 = vmul.f32 %v1288, %v1292
  %1296 = vrot.lane.b32.xlu0 %v1294, 32
  %v1297 = vpop.permute.xlu0 %1296
  %v1299 = vadd.f32 %v1289, %v1297
  %v1300 = vtanh.pop %v1299
  %1302 = vrot.lane.b32.xlu0 %v1300, 64
  %v1303 = vpop.permute.xlu0 %1302
  %v1305 = vmul.f32 %v1288, %v1303
  %v1306 = vld [vmem:[%s4] sm:$0xff]
  %v1307 = vld [vmem:[%s4 + $0x8] sm:$0xff]
  %v1308 = vld [vmem:[%s4 + $0x10] sm:$0xff]
  %v1309 = vld [vmem:[%s4 + $0x18] sm:$0xff]
  %v1310 = vld [vmem:[%s5] sm:$0x1]
  %v1312 = vperm.slane %v1310, 0
  %1315 = vrot.lane.b32.xlu0 %v1305, 32
  %v1316 = vpop.permute.xlu0 %1315
  %v1317 = vsel %vm50, %v1316, 0
  %1319 = vmatpush.msra.mxu0 0.0
  %1320 = vmatpush.msra.mxu0 0.0
  %1321 = vmatpush.msra.mxu0 0.0
  %1322 = vmatpush.msra.mxu0 0.0
  %1323 = vmatpush.msra.mxu0 0.0
  %1324 = vmatpush.msra.mxu0 0.0
  %1325 = vmatpush.msra.mxu0 0.0
  %1326 = vmatpush.msra.mxu0 0.0
  %1327 = vmatpush.msra.mxu0 0.0
  %1328 = vmatpush.msra.mxu0 0.0
  %1329 = vmatpush.msra.mxu0 0.0
  %1330 = vmatpush.msra.mxu0 0.0
  %1331 = vmatpush.msra.mxu0 %v1309
  %1332 = vmatpush.msra.mxu0 %v1308
  %1333 = vmatpush.msra.mxu0 %v1307
  %1334 = vmatpush.msra.mxu0 %v1306
  %1335 = vmatmul.f32.gmra.mxu0 %v1317
  %v1336 = vpop.f32.mrf.mxu0
  %v1337 = vadd.f32 %v1312, %v1336
  %1338 = vdwg.mxu0
  %1339 = vst [vmem:[%s6] sm:$0xff] %v1337
  // Predicated region
  $region26: #{lstm_model_forward.1} parent=0 // pred_check
    _
  $region27: #{lstm_model_forward.1} parent=0 // pred_check_branch
    %1341 = sbr.rel (0) target = $region29
  $region28: #{lstm_model_forward.1} parent=0 // pred_region
    _
  $region29: #{lstm_model_forward.1} parent=0 // pred_fallthru
    _
  // Predicated region
  $region30: #{lstm_model_forward.1} parent=0 // pred_check
    _
  $region31: #{lstm_model_forward.1} parent=0 // pred_check_branch
    %1343 = sbr.rel (0) target = $region33
  $region32: #{lstm_model_forward.1} parent=0 // pred_region
    _
  $region33: #{lstm_model_forward.1} parent=0 // pred_fallthru
    _

</llo_original>
